<compile_context>
chip_gen: v5e
topology: v5e:2x2
jax: 0.10.0
libtpu: 0.0.40
codegen_flags: <defaults>
</compile_context>

<pallas_src>
import functools

import jax
import jax.numpy as jnp
from jax import lax
from jax.experimental import pallas as pl
from jax.experimental.pallas import tpu as pltpu

_UNROLL_MAX_T = 32  # fully unroll the in-kernel time loops below this length


def _lstm_cell(gates, c_prev, H):
    """PyTorch-ordered LSTM cell update from pre-activation gates (B, 4H)."""
    i_g = jax.nn.sigmoid(gates[:, 0 * H:1 * H])
    f_g = jax.nn.sigmoid(gates[:, 1 * H:2 * H])
    g_g = jnp.tanh(gates[:, 2 * H:3 * H])
    o_g = jax.nn.sigmoid(gates[:, 3 * H:4 * H])
    c_new = f_g * c_prev + i_g * g_g
    h_new = o_g * jnp.tanh(c_new)
    return h_new, c_new


# --------------------------- fused LSTM + FC kernel ---------------------------
def _fused_lstm_fc_kernel(*refs, num_layers, seq_len, hidden_dim, batch, unroll):
    L, T, H, B = num_layers, seq_len, hidden_dim, batch

    it = iter(refs)
    gx0_ref = next(it)                                              # (T, B, 4H) layer-0 gate inputs
    whh0_ref = next(it)                                             # (H, 4H)
    deep = [(next(it), next(it), next(it)) for _ in range(L - 1)]   # (w_ih_t, w_hh_t, bias)
    fcw_ref = next(it)                                              # (H, O)
    fcb_ref = next(it)                                              # (1, O)
    out_ref = next(it)                                              # (B, O)
    act_ref = next(it)                                              # (T, B, H) inter-layer activations
    gx_ref = next(it)                                               # (T, B, 4H) hoisted input proj.

    def run_recurrence(gxr, whh, write_act):
        """Serial time loop; per step only the h_prev @ W_hh matmul + gate math."""
        h0 = jnp.zeros((B, H), jnp.float32)
        c0 = jnp.zeros((B, H), jnp.float32)

        def step(t, h, c):
            gates = gxr[t] + jnp.dot(h, whh, preferred_element_type=jnp.float32)
            h_new, c_new = _lstm_cell(gates, c, H)
            if write_act:                 # static Python bool (skipped for last layer)
                act_ref[t] = h_new
            return h_new, c_new

        if unroll:                        # static trip count -> full unroll at trace time
            h, c = h0, c0
            for t in range(T):
                h, c = step(t, h, c)
            return h
        else:
            def body(t, carry):
                return step(t, *carry)
            h, _ = lax.fori_loop(0, T, body, (h0, c0))
            return h

    # ----- layer 0: input projection was hoisted outside the kernel (gx0) -----
    h_last = run_recurrence(gx0_ref, whh0_ref[...], write_act=(L > 1))

    # ----- layers 1 .. L-1 -----
    for li, (wih_r, whh_r, b_r) in enumerate(deep):
        wih = wih_r[...]
        b = jnp.broadcast_to(b_r[...], (B, 4 * H))   # hoist broadcast out of the loop

        # Hoisted input projection for this layer: T independent GEMMs, not on the
        # recurrent dependency chain.
        if unroll:
            for t in range(T):
                gx_ref[t] = jnp.dot(act_ref[t], wih,
                                    preferred_element_type=jnp.float32) + b
        else:
            def proj(t, carry, wih=wih, b=b):
                gx_ref[t] = jnp.dot(act_ref[t], wih,
                                    preferred_element_type=jnp.float32) + b
                return carry
            lax.fori_loop(0, T, proj, 0)

        is_last = li == (L - 2)
        h_last = run_recurrence(gx_ref, whh_r[...], write_act=not is_last)

    # ----- fused final Linear on the last hidden state (no (T,B,H) writeback) -----
    out_ref[...] = (jnp.dot(h_last, fcw_ref[...],
                            preferred_element_type=jnp.float32) + fcb_ref[...])


def _fused_forward(gx0, whh0, deep_weights, fc_w_t, fc_b):
    T, B, G = gx0.shape
    H = whh0.shape[0]
    O = fc_w_t.shape[1]
    L = 1 + len(deep_weights)

    inputs = [gx0, whh0]
    in_specs = [
        pl.BlockSpec((T, B, G), lambda i: (0, 0, 0)),
        pl.BlockSpec((H, G), lambda i: (0, 0)),
    ]
    for wih, whh, bias in deep_weights:
        inputs += [wih, whh, bias]
        in_specs += [
            pl.BlockSpec((H, G), lambda i: (0, 0)),
            pl.BlockSpec((H, G), lambda i: (0, 0)),
            pl.BlockSpec((1, G), lambda i: (0, 0)),
        ]
    inputs += [fc_w_t, fc_b]
    in_specs += [
        pl.BlockSpec((H, O), lambda i: (0, 0)),
        pl.BlockSpec((1, O), lambda i: (0, 0)),
    ]

    # Inter-layer scratch is only needed when there is more than one layer.
    T_scratch = T if L > 1 else 1

    kernel = functools.partial(
        _fused_lstm_fc_kernel,
        num_layers=L, seq_len=T, hidden_dim=H, batch=B,
        unroll=(T <= _UNROLL_MAX_T),
    )

    return pl.pallas_call(
        kernel,
        out_shape=jax.ShapeDtypeStruct((B, O), jnp.float32),
        grid_spec=pltpu.PrefetchScalarGridSpec(
            num_scalar_prefetch=0,
            grid=(1,),
            in_specs=in_specs,
            out_specs=pl.BlockSpec((B, O), lambda i: (0, 0)),
            scratch_shapes=[
                pltpu.VMEM((T_scratch, B, H), jnp.float32),  # inter-layer activations
                pltpu.VMEM((T_scratch, B, G), jnp.float32),  # hoisted per-layer input proj.
            ],
        ),
        compiler_params=pltpu.CompilerParams(
            dimension_semantics=("arbitrary",),
            vmem_limit_bytes=32 * 1024 * 1024,
        ),
    )(*inputs)


# --------------------------------- model -------------------------------------
def init_lstm_model_params(key, input_dim, hidden_dim, output_dim, num_layers):
    """Deterministic init mimicking PyTorch's U(-1/sqrt(H), 1/sqrt(H))."""
    params = {"layers": []}
    k = 1.0 / jnp.sqrt(jnp.float32(hidden_dim))
    for layer in range(num_layers):
        d_in = input_dim if layer == 0 else hidden_dim
        key, k1, k2, k3, k4 = jax.random.split(key, 5)
        w_ih = jax.random.uniform(k1, (4 * hidden_dim, d_in), jnp.float32, -k, k)
        w_hh = jax.random.uniform(k2, (4 * hidden_dim, hidden_dim), jnp.float32, -k, k)
        b_ih = jax.random.uniform(k3, (4 * hidden_dim,), jnp.float32, -k, k)
        b_hh = jax.random.uniform(k4, (4 * hidden_dim,), jnp.float32, -k, k)
        params["layers"].append(
            {
                "w_ih_t": w_ih.T,                   # (D_in, 4H)
                "w_hh_t": w_hh.T,                   # (H, 4H)
                "bias": (b_ih + b_hh)[None, :],     # (1, 4H)
            }
        )
    key, k5, k6 = jax.random.split(key, 3)
    fc_w = jax.random.uniform(k5, (output_dim, hidden_dim), jnp.float32, -k, k)
    fc_b = jax.random.uniform(k6, (output_dim,), jnp.float32, -k, k)
    params["fc_w_t"] = fc_w.T                       # (H, O)
    params["fc_b"] = fc_b[None, :]                  # (1, O)
    return params


@jax.jit
def lstm_model_forward(params, x):
    """x: (B, T, D) batch_first, like the PyTorch module. Returns (B, output_dim)."""
    # TODO(synk): nn.LSTM inter-layer dropout applies only in training mode; this is
    # the eval/inference forward, so dropout is the identity and is omitted.
    x = x.astype(jnp.float32)
    layers = params["layers"]
    l0 = layers[0]

    # Hoisted layer-0 input projection: one time-batched GEMM over all T*B rows,
    # emitted directly in time-major (T, B, 4H) layout with the combined bias
    # folded in (subsumes the (B,T,D)->(T,B,D) transpose).
    gx0 = jnp.einsum("btd,dg->tbg", x, l0["w_ih_t"],
                     preferred_element_type=jnp.float32) + l0["bias"]

    deep = [(lp["w_ih_t"], lp["w_hh_t"], lp["bias"]) for lp in layers[1:]]
    return _fused_forward(gx0, l0["w_hh_t"], deep, params["fc_w_t"], params["fc_b"])


def _reference_forward(params, x):
    """Pure-JAX/XLA reference of the same eval-mode forward (for the self-check)."""
    x = jnp.asarray(x, jnp.float32)
    B, T, _ = x.shape
    out = x
    for lp in params["layers"]:
        H = lp["w_hh_t"].shape[0]
        h = jnp.zeros((B, H), jnp.float32)
        c = jnp.zeros((B, H), jnp.float32)
        hs = []
        for t in range(T):
            gates = out[:, t, :] @ lp["w_ih_t"] + h @ lp["w_hh_t"] + lp["bias"]
            h, c = _lstm_cell(gates, c, H)
            hs.append(h)
        out = jnp.stack(hs, axis=1)                 # (B, T, H)
    return out[:, -1, :] @ params["fc_w_t"] + params["fc_b"]


if __name__ == "__main__":
    B, T, D, H, O, L = 2, 8, 16, 32, 4, 2

    key = jax.random.PRNGKey(0)
    key, pkey, xkey = jax.random.split(key, 3)

    params = init_lstm_model_params(pkey, D, H, O, L)
    x = jax.random.normal(xkey, (B, T, D), jnp.float32)

    y = lstm_model_forward(params, x)
    jax.block_until_ready(y)
    assert y.shape == (B, O), y.shape

    y_ref = _reference_forward(params, x)
    assert jnp.allclose(y, y_ref, rtol=2e-2, atol=2e-2), (
        "max abs diff = %g" % float(jnp.max(jnp.abs(y - y_ref))))

    print("KERNEL_OK")
</pallas_src>

<mosaic_0001>
module attributes {stable_mosaic.version = 11 : i64} {
  func.func @_fused_lstm_fc_kernel(%arg0: i32, %arg1: memref<8x2x128xf32, #tpu.memory_space<vmem>>, %arg2: memref<32x128xf32, #tpu.memory_space<vmem>>, %arg3: memref<32x128xf32, #tpu.memory_space<vmem>>, %arg4: memref<32x128xf32, #tpu.memory_space<vmem>>, %arg5: memref<1x128xf32, #tpu.memory_space<vmem>>, %arg6: memref<32x4xf32, #tpu.memory_space<vmem>>, %arg7: memref<1x4xf32, #tpu.memory_space<vmem>>, %arg8: memref<2x4xf32, #tpu.memory_space<vmem>>, %arg9: memref<8x2x32xf32, #tpu.memory_space<vmem>>, %arg10: memref<8x2x128xf32, #tpu.memory_space<vmem>>) attributes {dimension_semantics = [#tpu.dimension_semantics<arbitrary>], iteration_bounds = array<i64: 1>, scalar_prefetch = 0 : i64, scratch_operands = 2 : i64, tpu.core_type = #tpu.core_type<tc>, window_params = [{pipeline_mode = #tpu.pipeline_mode<synchronous>, transform_indices = @transform_0, window_bounds = array<i64: 8, 2, 128>}, {pipeline_mode = #tpu.pipeline_mode<synchronous>, transform_indices = @transform_1, window_bounds = array<i64: 32, 128>}, {pipeline_mode = #tpu.pipeline_mode<synchronous>, transform_indices = @transform_2, window_bounds = array<i64: 32, 128>}, {pipeline_mode = #tpu.pipeline_mode<synchronous>, transform_indices = @transform_3, window_bounds = array<i64: 32, 128>}, {pipeline_mode = #tpu.pipeline_mode<synchronous>, transform_indices = @transform_4, window_bounds = array<i64: 1, 128>}, {pipeline_mode = #tpu.pipeline_mode<synchronous>, transform_indices = @transform_5, window_bounds = array<i64: 32, 4>}, {pipeline_mode = #tpu.pipeline_mode<synchronous>, transform_indices = @transform_6, window_bounds = array<i64: 1, 4>}, {pipeline_mode = #tpu.pipeline_mode<synchronous>, transform_indices = @transform_7, window_bounds = array<i64: 2, 4>}]} {
    %c0 = arith.constant 0 : index
    %c0_0 = arith.constant 0 : index
    %0 = vector.load %arg2[%c0, %c0_0] : memref<32x128xf32, #tpu.memory_space<vmem>>, vector<32x128xf32>
    %cst = arith.constant 0.000000e+00 : f32
    %1 = vector.broadcast %cst : f32 to vector<2x32xf32>
    %cst_1 = arith.constant 0.000000e+00 : f32
    %2 = vector.broadcast %cst_1 : f32 to vector<2x32xf32>
    %c0_2 = arith.constant 0 : index
    %c0_3 = arith.constant 0 : index
    %c0_4 = arith.constant 0 : index
    %3 = vector.load %arg1[%c0_2, %c0_3, %c0_4] : memref<8x2x128xf32, #tpu.memory_space<vmem>>, vector<1x2x128xf32>
    %4 = vector.shape_cast %3 : vector<1x2x128xf32> to vector<2x128xf32>
    %cst_5 = arith.constant dense<0.000000e+00> : vector<2x128xf32>
    %5 = tpu.matmul %1, %0, %cst_5 {dimension_numbers = #tpu.dot_dimension_numbers<[1], [0], [0], [1], [0, 0, 1, 1], [], []>} : vector<2x32xf32>, vector<32x128xf32>, vector<2x128xf32> -> vector<2x128xf32>
    %6 = arith.addf %4, %5 : vector<2x128xf32>
    %7 = vector.extract_strided_slice %6 {offsets = [0, 0], sizes = [2, 32], strides = [1, 1]} : vector<2x128xf32> to vector<2x32xf32>
    %8 = arith.negf %7 : vector<2x32xf32>
    %9 = math.exp %8 : vector<2x32xf32>
    %cst_6 = arith.constant 1.000000e+00 : f32
    %10 = vector.broadcast %cst_6 : f32 to vector<2x32xf32>
    %11 = arith.addf %10, %9 : vector<2x32xf32>
    %12 = arith.divf %10, %11 : vector<2x32xf32>
    %13 = vector.extract_strided_slice %6 {offsets = [0, 32], sizes = [2, 32], strides = [1, 1]} : vector<2x128xf32> to vector<2x32xf32>
    %14 = arith.negf %13 : vector<2x32xf32>
    %15 = math.exp %14 : vector<2x32xf32>
    %cst_7 = arith.constant 1.000000e+00 : f32
    %16 = vector.broadcast %cst_7 : f32 to vector<2x32xf32>
    %17 = arith.addf %16, %15 : vector<2x32xf32>
    %18 = arith.divf %16, %17 : vector<2x32xf32>
    %19 = vector.extract_strided_slice %6 {offsets = [0, 64], sizes = [2, 32], strides = [1, 1]} : vector<2x128xf32> to vector<2x32xf32>
    %20 = math.tanh %19 : vector<2x32xf32>
    %21 = vector.extract_strided_slice %6 {offsets = [0, 96], sizes = [2, 32], strides = [1, 1]} : vector<2x128xf32> to vector<2x32xf32>
    %22 = arith.negf %21 : vector<2x32xf32>
    %23 = math.exp %22 : vector<2x32xf32>
    %cst_8 = arith.constant 1.000000e+00 : f32
    %24 = vector.broadcast %cst_8 : f32 to vector<2x32xf32>
    %25 = arith.addf %24, %23 : vector<2x32xf32>
    %26 = arith.divf %24, %25 : vector<2x32xf32>
    %27 = arith.mulf %18, %2 : vector<2x32xf32>
    %28 = arith.mulf %12, %20 : vector<2x32xf32>
    %29 = arith.addf %27, %28 : vector<2x32xf32>
    %30 = math.tanh %29 : vector<2x32xf32>
    %31 = arith.mulf %26, %30 : vector<2x32xf32>
    %c0_9 = arith.constant 0 : index
    %c0_10 = arith.constant 0 : index
    %c0_11 = arith.constant 0 : index
    %32 = vector.load %arg9[%c0_9, %c0_10, %c0_11] : memref<8x2x32xf32, #tpu.memory_space<vmem>>, vector<1x2x32xf32>
    %33 = vector.shape_cast %32 : vector<1x2x32xf32> to vector<2x32xf32>
    %34 = vector.shape_cast %31 : vector<2x32xf32> to vector<1x2x32xf32>
    tpu.vector_store %arg9[%c0_9, %c0_10, %c0_11], %34 {strides = array<i32>} : memref<8x2x32xf32, #tpu.memory_space<vmem>>, vector<1x2x32xf32>,
    %c1 = arith.constant 1 : index
    %c0_12 = arith.constant 0 : index
    %c0_13 = arith.constant 0 : index
    %35 = vector.load %arg1[%c1, %c0_12, %c0_13] : memref<8x2x128xf32, #tpu.memory_space<vmem>>, vector<1x2x128xf32>
    %36 = vector.shape_cast %35 : vector<1x2x128xf32> to vector<2x128xf32>
    %cst_14 = arith.constant dense<0.000000e+00> : vector<2x128xf32>
    %37 = tpu.matmul %31, %0, %cst_14 {dimension_numbers = #tpu.dot_dimension_numbers<[1], [0], [0], [1], [0, 0, 1, 1], [], []>} : vector<2x32xf32>, vector<32x128xf32>, vector<2x128xf32> -> vector<2x128xf32>
    %38 = arith.addf %36, %37 : vector<2x128xf32>
    %39 = vector.extract_strided_slice %38 {offsets = [0, 0], sizes = [2, 32], strides = [1, 1]} : vector<2x128xf32> to vector<2x32xf32>
    %40 = arith.negf %39 : vector<2x32xf32>
    %41 = math.exp %40 : vector<2x32xf32>
    %cst_15 = arith.constant 1.000000e+00 : f32
    %42 = vector.broadcast %cst_15 : f32 to vector<2x32xf32>
    %43 = arith.addf %42, %41 : vector<2x32xf32>
    %44 = arith.divf %42, %43 : vector<2x32xf32>
    %45 = vector.extract_strided_slice %38 {offsets = [0, 32], sizes = [2, 32], strides = [1, 1]} : vector<2x128xf32> to vector<2x32xf32>
    %46 = arith.negf %45 : vector<2x32xf32>
    %47 = math.exp %46 : vector<2x32xf32>
    %cst_16 = arith.constant 1.000000e+00 : f32
    %48 = vector.broadcast %cst_16 : f32 to vector<2x32xf32>
    %49 = arith.addf %48, %47 : vector<2x32xf32>
    %50 = arith.divf %48, %49 : vector<2x32xf32>
    %51 = vector.extract_strided_slice %38 {offsets = [0, 64], sizes = [2, 32], strides = [1, 1]} : vector<2x128xf32> to vector<2x32xf32>
    %52 = math.tanh %51 : vector<2x32xf32>
    %53 = vector.extract_strided_slice %38 {offsets = [0, 96], sizes = [2, 32], strides = [1, 1]} : vector<2x128xf32> to vector<2x32xf32>
    %54 = arith.negf %53 : vector<2x32xf32>
    %55 = math.exp %54 : vector<2x32xf32>
    %cst_17 = arith.constant 1.000000e+00 : f32
    %56 = vector.broadcast %cst_17 : f32 to vector<2x32xf32>
    %57 = arith.addf %56, %55 : vector<2x32xf32>
    %58 = arith.divf %56, %57 : vector<2x32xf32>
    %59 = arith.mulf %50, %29 : vector<2x32xf32>
    %60 = arith.mulf %44, %52 : vector<2x32xf32>
    %61 = arith.addf %59, %60 : vector<2x32xf32>
    %62 = math.tanh %61 : vector<2x32xf32>
    %63 = arith.mulf %58, %62 : vector<2x32xf32>
    %c1_18 = arith.constant 1 : index
    %c0_19 = arith.constant 0 : index
    %c0_20 = arith.constant 0 : index
    %64 = vector.load %arg9[%c1_18, %c0_19, %c0_20] : memref<8x2x32xf32, #tpu.memory_space<vmem>>, vector<1x2x32xf32>
    %65 = vector.shape_cast %64 : vector<1x2x32xf32> to vector<2x32xf32>
    %66 = vector.shape_cast %63 : vector<2x32xf32> to vector<1x2x32xf32>
    tpu.vector_store %arg9[%c1_18, %c0_19, %c0_20], %66 {strides = array<i32>} : memref<8x2x32xf32, #tpu.memory_space<vmem>>, vector<1x2x32xf32>,
    %c2 = arith.constant 2 : index
    %c0_21 = arith.constant 0 : index
    %c0_22 = arith.constant 0 : index
    %67 = vector.load %arg1[%c2, %c0_21, %c0_22] : memref<8x2x128xf32, #tpu.memory_space<vmem>>, vector<1x2x128xf32>
    %68 = vector.shape_cast %67 : vector<1x2x128xf32> to vector<2x128xf32>
    %cst_23 = arith.constant dense<0.000000e+00> : vector<2x128xf32>
    %69 = tpu.matmul %63, %0, %cst_23 {dimension_numbers = #tpu.dot_dimension_numbers<[1], [0], [0], [1], [0, 0, 1, 1], [], []>} : vector<2x32xf32>, vector<32x128xf32>, vector<2x128xf32> -> vector<2x128xf32>
    %70 = arith.addf %68, %69 : vector<2x128xf32>
    %71 = vector.extract_strided_slice %70 {offsets = [0, 0], sizes = [2, 32], strides = [1, 1]} : vector<2x128xf32> to vector<2x32xf32>
    %72 = arith.negf %71 : vector<2x32xf32>
    %73 = math.exp %72 : vector<2x32xf32>
    %cst_24 = arith.constant 1.000000e+00 : f32
    %74 = vector.broadcast %cst_24 : f32 to vector<2x32xf32>
    %75 = arith.addf %74, %73 : vector<2x32xf32>
    %76 = arith.divf %74, %75 : vector<2x32xf32>
    %77 = vector.extract_strided_slice %70 {offsets = [0, 32], sizes = [2, 32], strides = [1, 1]} : vector<2x128xf32> to vector<2x32xf32>
    %78 = arith.negf %77 : vector<2x32xf32>
    %79 = math.exp %78 : vector<2x32xf32>
    %cst_25 = arith.constant 1.000000e+00 : f32
    %80 = vector.broadcast %cst_25 : f32 to vector<2x32xf32>
    %81 = arith.addf %80, %79 : vector<2x32xf32>
    %82 = arith.divf %80, %81 : vector<2x32xf32>
    %83 = vector.extract_strided_slice %70 {offsets = [0, 64], sizes = [2, 32], strides = [1, 1]} : vector<2x128xf32> to vector<2x32xf32>
    %84 = math.tanh %83 : vector<2x32xf32>
    %85 = vector.extract_strided_slice %70 {offsets = [0, 96], sizes = [2, 32], strides = [1, 1]} : vector<2x128xf32> to vector<2x32xf32>
    %86 = arith.negf %85 : vector<2x32xf32>
    %87 = math.exp %86 : vector<2x32xf32>
    %cst_26 = arith.constant 1.000000e+00 : f32
    %88 = vector.broadcast %cst_26 : f32 to vector<2x32xf32>
    %89 = arith.addf %88, %87 : vector<2x32xf32>
    %90 = arith.divf %88, %89 : vector<2x32xf32>
    %91 = arith.mulf %82, %61 : vector<2x32xf32>
    %92 = arith.mulf %76, %84 : vector<2x32xf32>
    %93 = arith.addf %91, %92 : vector<2x32xf32>
    %94 = math.tanh %93 : vector<2x32xf32>
    %95 = arith.mulf %90, %94 : vector<2x32xf32>
    %c2_27 = arith.constant 2 : index
    %c0_28 = arith.constant 0 : index
    %c0_29 = arith.constant 0 : index
    %96 = vector.load %arg9[%c2_27, %c0_28, %c0_29] : memref<8x2x32xf32, #tpu.memory_space<vmem>>, vector<1x2x32xf32>
    %97 = vector.shape_cast %96 : vector<1x2x32xf32> to vector<2x32xf32>
    %98 = vector.shape_cast %95 : vector<2x32xf32> to vector<1x2x32xf32>
    tpu.vector_store %arg9[%c2_27, %c0_28, %c0_29], %98 {strides = array<i32>} : memref<8x2x32xf32, #tpu.memory_space<vmem>>, vector<1x2x32xf32>,
    %c3 = arith.constant 3 : index
    %c0_30 = arith.constant 0 : index
    %c0_31 = arith.constant 0 : index
    %99 = vector.load %arg1[%c3, %c0_30, %c0_31] : memref<8x2x128xf32, #tpu.memory_space<vmem>>, vector<1x2x128xf32>
    %100 = vector.shape_cast %99 : vector<1x2x128xf32> to vector<2x128xf32>
    %cst_32 = arith.constant dense<0.000000e+00> : vector<2x128xf32>
    %101 = tpu.matmul %95, %0, %cst_32 {dimension_numbers = #tpu.dot_dimension_numbers<[1], [0], [0], [1], [0, 0, 1, 1], [], []>} : vector<2x32xf32>, vector<32x128xf32>, vector<2x128xf32> -> vector<2x128xf32>
    %102 = arith.addf %100, %101 : vector<2x128xf32>
    %103 = vector.extract_strided_slice %102 {offsets = [0, 0], sizes = [2, 32], strides = [1, 1]} : vector<2x128xf32> to vector<2x32xf32>
    %104 = arith.negf %103 : vector<2x32xf32>
    %105 = math.exp %104 : vector<2x32xf32>
    %cst_33 = arith.constant 1.000000e+00 : f32
    %106 = vector.broadcast %cst_33 : f32 to vector<2x32xf32>
    %107 = arith.addf %106, %105 : vector<2x32xf32>
    %108 = arith.divf %106, %107 : vector<2x32xf32>
    %109 = vector.extract_strided_slice %102 {offsets = [0, 32], sizes = [2, 32], strides = [1, 1]} : vector<2x128xf32> to vector<2x32xf32>
    %110 = arith.negf %109 : vector<2x32xf32>
    %111 = math.exp %110 : vector<2x32xf32>
    %cst_34 = arith.constant 1.000000e+00 : f32
    %112 = vector.broadcast %cst_34 : f32 to vector<2x32xf32>
    %113 = arith.addf %112, %111 : vector<2x32xf32>
    %114 = arith.divf %112, %113 : vector<2x32xf32>
    %115 = vector.extract_strided_slice %102 {offsets = [0, 64], sizes = [2, 32], strides = [1, 1]} : vector<2x128xf32> to vector<2x32xf32>
    %116 = math.tanh %115 : vector<2x32xf32>
    %117 = vector.extract_strided_slice %102 {offsets = [0, 96], sizes = [2, 32], strides = [1, 1]} : vector<2x128xf32> to vector<2x32xf32>
    %118 = arith.negf %117 : vector<2x32xf32>
    %119 = math.exp %118 : vector<2x32xf32>
    %cst_35 = arith.constant 1.000000e+00 : f32
    %120 = vector.broadcast %cst_35 : f32 to vector<2x32xf32>
    %121 = arith.addf %120, %119 : vector<2x32xf32>
    %122 = arith.divf %120, %121 : vector<2x32xf32>
    %123 = arith.mulf %114, %93 : vector<2x32xf32>
    %124 = arith.mulf %108, %116 : vector<2x32xf32>
    %125 = arith.addf %123, %124 : vector<2x32xf32>
    %126 = math.tanh %125 : vector<2x32xf32>
    %127 = arith.mulf %122, %126 : vector<2x32xf32>
    %c3_36 = arith.constant 3 : index
    %c0_37 = arith.constant 0 : index
    %c0_38 = arith.constant 0 : index
    %128 = vector.load %arg9[%c3_36, %c0_37, %c0_38] : memref<8x2x32xf32, #tpu.memory_space<vmem>>, vector<1x2x32xf32>
    %129 = vector.shape_cast %128 : vector<1x2x32xf32> to vector<2x32xf32>
    %130 = vector.shape_cast %127 : vector<2x32xf32> to vector<1x2x32xf32>
    tpu.vector_store %arg9[%c3_36, %c0_37, %c0_38], %130 {strides = array<i32>} : memref<8x2x32xf32, #tpu.memory_space<vmem>>, vector<1x2x32xf32>,
    %c4 = arith.constant 4 : index
    %c0_39 = arith.constant 0 : index
    %c0_40 = arith.constant 0 : index
    %131 = vector.load %arg1[%c4, %c0_39, %c0_40] : memref<8x2x128xf32, #tpu.memory_space<vmem>>, vector<1x2x128xf32>
    %132 = vector.shape_cast %131 : vector<1x2x128xf32> to vector<2x128xf32>
    %cst_41 = arith.constant dense<0.000000e+00> : vector<2x128xf32>
    %133 = tpu.matmul %127, %0, %cst_41 {dimension_numbers = #tpu.dot_dimension_numbers<[1], [0], [0], [1], [0, 0, 1, 1], [], []>} : vector<2x32xf32>, vector<32x128xf32>, vector<2x128xf32> -> vector<2x128xf32>
    %134 = arith.addf %132, %133 : vector<2x128xf32>
    %135 = vector.extract_strided_slice %134 {offsets = [0, 0], sizes = [2, 32], strides = [1, 1]} : vector<2x128xf32> to vector<2x32xf32>
    %136 = arith.negf %135 : vector<2x32xf32>
    %137 = math.exp %136 : vector<2x32xf32>
    %cst_42 = arith.constant 1.000000e+00 : f32
    %138 = vector.broadcast %cst_42 : f32 to vector<2x32xf32>
    %139 = arith.addf %138, %137 : vector<2x32xf32>
    %140 = arith.divf %138, %139 : vector<2x32xf32>
    %141 = vector.extract_strided_slice %134 {offsets = [0, 32], sizes = [2, 32], strides = [1, 1]} : vector<2x128xf32> to vector<2x32xf32>
    %142 = arith.negf %141 : vector<2x32xf32>
    %143 = math.exp %142 : vector<2x32xf32>
    %cst_43 = arith.constant 1.000000e+00 : f32
    %144 = vector.broadcast %cst_43 : f32 to vector<2x32xf32>
    %145 = arith.addf %144, %143 : vector<2x32xf32>
    %146 = arith.divf %144, %145 : vector<2x32xf32>
    %147 = vector.extract_strided_slice %134 {offsets = [0, 64], sizes = [2, 32], strides = [1, 1]} : vector<2x128xf32> to vector<2x32xf32>
    %148 = math.tanh %147 : vector<2x32xf32>
    %149 = vector.extract_strided_slice %134 {offsets = [0, 96], sizes = [2, 32], strides = [1, 1]} : vector<2x128xf32> to vector<2x32xf32>
    %150 = arith.negf %149 : vector<2x32xf32>
    %151 = math.exp %150 : vector<2x32xf32>
    %cst_44 = arith.constant 1.000000e+00 : f32
    %152 = vector.broadcast %cst_44 : f32 to vector<2x32xf32>
    %153 = arith.addf %152, %151 : vector<2x32xf32>
    %154 = arith.divf %152, %153 : vector<2x32xf32>
    %155 = arith.mulf %146, %125 : vector<2x32xf32>
    %156 = arith.mulf %140, %148 : vector<2x32xf32>
    %157 = arith.addf %155, %156 : vector<2x32xf32>
    %158 = math.tanh %157 : vector<2x32xf32>
    %159 = arith.mulf %154, %158 : vector<2x32xf32>
    %c4_45 = arith.constant 4 : index
    %c0_46 = arith.constant 0 : index
    %c0_47 = arith.constant 0 : index
    %160 = vector.load %arg9[%c4_45, %c0_46, %c0_47] : memref<8x2x32xf32, #tpu.memory_space<vmem>>, vector<1x2x32xf32>
    %161 = vector.shape_cast %160 : vector<1x2x32xf32> to vector<2x32xf32>
    %162 = vector.shape_cast %159 : vector<2x32xf32> to vector<1x2x32xf32>
    tpu.vector_store %arg9[%c4_45, %c0_46, %c0_47], %162 {strides = array<i32>} : memref<8x2x32xf32, #tpu.memory_space<vmem>>, vector<1x2x32xf32>,
    %c5 = arith.constant 5 : index
    %c0_48 = arith.constant 0 : index
    %c0_49 = arith.constant 0 : index
    %163 = vector.load %arg1[%c5, %c0_48, %c0_49] : memref<8x2x128xf32, #tpu.memory_space<vmem>>, vector<1x2x128xf32>
    %164 = vector.shape_cast %163 : vector<1x2x128xf32> to vector<2x128xf32>
    %cst_50 = arith.constant dense<0.000000e+00> : vector<2x128xf32>
    %165 = tpu.matmul %159, %0, %cst_50 {dimension_numbers = #tpu.dot_dimension_numbers<[1], [0], [0], [1], [0, 0, 1, 1], [], []>} : vector<2x32xf32>, vector<32x128xf32>, vector<2x128xf32> -> vector<2x128xf32>
    %166 = arith.addf %164, %165 : vector<2x128xf32>
    %167 = vector.extract_strided_slice %166 {offsets = [0, 0], sizes = [2, 32], strides = [1, 1]} : vector<2x128xf32> to vector<2x32xf32>
    %168 = arith.negf %167 : vector<2x32xf32>
    %169 = math.exp %168 : vector<2x32xf32>
    %cst_51 = arith.constant 1.000000e+00 : f32
    %170 = vector.broadcast %cst_51 : f32 to vector<2x32xf32>
    %171 = arith.addf %170, %169 : vector<2x32xf32>
    %172 = arith.divf %170, %171 : vector<2x32xf32>
    %173 = vector.extract_strided_slice %166 {offsets = [0, 32], sizes = [2, 32], strides = [1, 1]} : vector<2x128xf32> to vector<2x32xf32>
    %174 = arith.negf %173 : vector<2x32xf32>
    %175 = math.exp %174 : vector<2x32xf32>
    %cst_52 = arith.constant 1.000000e+00 : f32
    %176 = vector.broadcast %cst_52 : f32 to vector<2x32xf32>
    %177 = arith.addf %176, %175 : vector<2x32xf32>
    %178 = arith.divf %176, %177 : vector<2x32xf32>
    %179 = vector.extract_strided_slice %166 {offsets = [0, 64], sizes = [2, 32], strides = [1, 1]} : vector<2x128xf32> to vector<2x32xf32>
    %180 = math.tanh %179 : vector<2x32xf32>
    %181 = vector.extract_strided_slice %166 {offsets = [0, 96], sizes = [2, 32], strides = [1, 1]} : vector<2x128xf32> to vector<2x32xf32>
    %182 = arith.negf %181 : vector<2x32xf32>
    %183 = math.exp %182 : vector<2x32xf32>
    %cst_53 = arith.constant 1.000000e+00 : f32
    %184 = vector.broadcast %cst_53 : f32 to vector<2x32xf32>
    %185 = arith.addf %184, %183 : vector<2x32xf32>
    %186 = arith.divf %184, %185 : vector<2x32xf32>
    %187 = arith.mulf %178, %157 : vector<2x32xf32>
    %188 = arith.mulf %172, %180 : vector<2x32xf32>
    %189 = arith.addf %187, %188 : vector<2x32xf32>
    %190 = math.tanh %189 : vector<2x32xf32>
    %191 = arith.mulf %186, %190 : vector<2x32xf32>
    %c5_54 = arith.constant 5 : index
    %c0_55 = arith.constant 0 : index
    %c0_56 = arith.constant 0 : index
    %192 = vector.load %arg9[%c5_54, %c0_55, %c0_56] : memref<8x2x32xf32, #tpu.memory_space<vmem>>, vector<1x2x32xf32>
    %193 = vector.shape_cast %192 : vector<1x2x32xf32> to vector<2x32xf32>
    %194 = vector.shape_cast %191 : vector<2x32xf32> to vector<1x2x32xf32>
    tpu.vector_store %arg9[%c5_54, %c0_55, %c0_56], %194 {strides = array<i32>} : memref<8x2x32xf32, #tpu.memory_space<vmem>>, vector<1x2x32xf32>,
    %c6 = arith.constant 6 : index
    %c0_57 = arith.constant 0 : index
    %c0_58 = arith.constant 0 : index
    %195 = vector.load %arg1[%c6, %c0_57, %c0_58] : memref<8x2x128xf32, #tpu.memory_space<vmem>>, vector<1x2x128xf32>
    %196 = vector.shape_cast %195 : vector<1x2x128xf32> to vector<2x128xf32>
    %cst_59 = arith.constant dense<0.000000e+00> : vector<2x128xf32>
    %197 = tpu.matmul %191, %0, %cst_59 {dimension_numbers = #tpu.dot_dimension_numbers<[1], [0], [0], [1], [0, 0, 1, 1], [], []>} : vector<2x32xf32>, vector<32x128xf32>, vector<2x128xf32> -> vector<2x128xf32>
    %198 = arith.addf %196, %197 : vector<2x128xf32>
    %199 = vector.extract_strided_slice %198 {offsets = [0, 0], sizes = [2, 32], strides = [1, 1]} : vector<2x128xf32> to vector<2x32xf32>
    %200 = arith.negf %199 : vector<2x32xf32>
    %201 = math.exp %200 : vector<2x32xf32>
    %cst_60 = arith.constant 1.000000e+00 : f32
    %202 = vector.broadcast %cst_60 : f32 to vector<2x32xf32>
    %203 = arith.addf %202, %201 : vector<2x32xf32>
    %204 = arith.divf %202, %203 : vector<2x32xf32>
    %205 = vector.extract_strided_slice %198 {offsets = [0, 32], sizes = [2, 32], strides = [1, 1]} : vector<2x128xf32> to vector<2x32xf32>
    %206 = arith.negf %205 : vector<2x32xf32>
    %207 = math.exp %206 : vector<2x32xf32>
    %cst_61 = arith.constant 1.000000e+00 : f32
    %208 = vector.broadcast %cst_61 : f32 to vector<2x32xf32>
    %209 = arith.addf %208, %207 : vector<2x32xf32>
    %210 = arith.divf %208, %209 : vector<2x32xf32>
    %211 = vector.extract_strided_slice %198 {offsets = [0, 64], sizes = [2, 32], strides = [1, 1]} : vector<2x128xf32> to vector<2x32xf32>
    %212 = math.tanh %211 : vector<2x32xf32>
    %213 = vector.extract_strided_slice %198 {offsets = [0, 96], sizes = [2, 32], strides = [1, 1]} : vector<2x128xf32> to vector<2x32xf32>
    %214 = arith.negf %213 : vector<2x32xf32>
    %215 = math.exp %214 : vector<2x32xf32>
    %cst_62 = arith.constant 1.000000e+00 : f32
    %216 = vector.broadcast %cst_62 : f32 to vector<2x32xf32>
    %217 = arith.addf %216, %215 : vector<2x32xf32>
    %218 = arith.divf %216, %217 : vector<2x32xf32>
    %219 = arith.mulf %210, %189 : vector<2x32xf32>
    %220 = arith.mulf %204, %212 : vector<2x32xf32>
    %221 = arith.addf %219, %220 : vector<2x32xf32>
    %222 = math.tanh %221 : vector<2x32xf32>
    %223 = arith.mulf %218, %222 : vector<2x32xf32>
    %c6_63 = arith.constant 6 : index
    %c0_64 = arith.constant 0 : index
    %c0_65 = arith.constant 0 : index
    %224 = vector.load %arg9[%c6_63, %c0_64, %c0_65] : memref<8x2x32xf32, #tpu.memory_space<vmem>>, vector<1x2x32xf32>
    %225 = vector.shape_cast %224 : vector<1x2x32xf32> to vector<2x32xf32>
    %226 = vector.shape_cast %223 : vector<2x32xf32> to vector<1x2x32xf32>
    tpu.vector_store %arg9[%c6_63, %c0_64, %c0_65], %226 {strides = array<i32>} : memref<8x2x32xf32, #tpu.memory_space<vmem>>, vector<1x2x32xf32>,
    %c7 = arith.constant 7 : index
    %c0_66 = arith.constant 0 : index
    %c0_67 = arith.constant 0 : index
    %227 = vector.load %arg1[%c7, %c0_66, %c0_67] : memref<8x2x128xf32, #tpu.memory_space<vmem>>, vector<1x2x128xf32>
    %228 = vector.shape_cast %227 : vector<1x2x128xf32> to vector<2x128xf32>
    %cst_68 = arith.constant dense<0.000000e+00> : vector<2x128xf32>
    %229 = tpu.matmul %223, %0, %cst_68 {dimension_numbers = #tpu.dot_dimension_numbers<[1], [0], [0], [1], [0, 0, 1, 1], [], []>} : vector<2x32xf32>, vector<32x128xf32>, vector<2x128xf32> -> vector<2x128xf32>
    %230 = arith.addf %228, %229 : vector<2x128xf32>
    %231 = vector.extract_strided_slice %230 {offsets = [0, 0], sizes = [2, 32], strides = [1, 1]} : vector<2x128xf32> to vector<2x32xf32>
    %232 = arith.negf %231 : vector<2x32xf32>
    %233 = math.exp %232 : vector<2x32xf32>
    %cst_69 = arith.constant 1.000000e+00 : f32
    %234 = vector.broadcast %cst_69 : f32 to vector<2x32xf32>
    %235 = arith.addf %234, %233 : vector<2x32xf32>
    %236 = arith.divf %234, %235 : vector<2x32xf32>
    %237 = vector.extract_strided_slice %230 {offsets = [0, 32], sizes = [2, 32], strides = [1, 1]} : vector<2x128xf32> to vector<2x32xf32>
    %238 = arith.negf %237 : vector<2x32xf32>
    %239 = math.exp %238 : vector<2x32xf32>
    %cst_70 = arith.constant 1.000000e+00 : f32
    %240 = vector.broadcast %cst_70 : f32 to vector<2x32xf32>
    %241 = arith.addf %240, %239 : vector<2x32xf32>
    %242 = arith.divf %240, %241 : vector<2x32xf32>
    %243 = vector.extract_strided_slice %230 {offsets = [0, 64], sizes = [2, 32], strides = [1, 1]} : vector<2x128xf32> to vector<2x32xf32>
    %244 = math.tanh %243 : vector<2x32xf32>
    %245 = vector.extract_strided_slice %230 {offsets = [0, 96], sizes = [2, 32], strides = [1, 1]} : vector<2x128xf32> to vector<2x32xf32>
    %246 = arith.negf %245 : vector<2x32xf32>
    %247 = math.exp %246 : vector<2x32xf32>
    %cst_71 = arith.constant 1.000000e+00 : f32
    %248 = vector.broadcast %cst_71 : f32 to vector<2x32xf32>
    %249 = arith.addf %248, %247 : vector<2x32xf32>
    %250 = arith.divf %248, %249 : vector<2x32xf32>
    %251 = arith.mulf %242, %221 : vector<2x32xf32>
    %252 = arith.mulf %236, %244 : vector<2x32xf32>
    %253 = arith.addf %251, %252 : vector<2x32xf32>
    %254 = math.tanh %253 : vector<2x32xf32>
    %255 = arith.mulf %250, %254 : vector<2x32xf32>
    %c7_72 = arith.constant 7 : index
    %c0_73 = arith.constant 0 : index
    %c0_74 = arith.constant 0 : index
    %256 = vector.load %arg9[%c7_72, %c0_73, %c0_74] : memref<8x2x32xf32, #tpu.memory_space<vmem>>, vector<1x2x32xf32>
    %257 = vector.shape_cast %256 : vector<1x2x32xf32> to vector<2x32xf32>
    %258 = vector.shape_cast %255 : vector<2x32xf32> to vector<1x2x32xf32>
    tpu.vector_store %arg9[%c7_72, %c0_73, %c0_74], %258 {strides = array<i32>} : memref<8x2x32xf32, #tpu.memory_space<vmem>>, vector<1x2x32xf32>,
    %c0_75 = arith.constant 0 : index
    %c0_76 = arith.constant 0 : index
    %259 = vector.load %arg3[%c0_75, %c0_76] : memref<32x128xf32, #tpu.memory_space<vmem>>, vector<32x128xf32>
    %c0_77 = arith.constant 0 : index
    %c0_78 = arith.constant 0 : index
    %260 = vector.load %arg5[%c0_77, %c0_78] : memref<1x128xf32, #tpu.memory_space<vmem>>, vector<1x128xf32>
    %261 = vector.shape_cast %260 : vector<1x128xf32> to vector<1x128xf32>
    %262 = vector.broadcast %261 : vector<1x128xf32> to vector<2x128xf32>
    %c0_79 = arith.constant 0 : index
    %c0_80 = arith.constant 0 : index
    %c0_81 = arith.constant 0 : index
    %263 = vector.load %arg9[%c0_79, %c0_80, %c0_81] : memref<8x2x32xf32, #tpu.memory_space<vmem>>, vector<1x2x32xf32>
    %264 = vector.shape_cast %263 : vector<1x2x32xf32> to vector<2x32xf32>
    %cst_82 = arith.constant dense<0.000000e+00> : vector<2x128xf32>
    %265 = tpu.matmul %264, %259, %cst_82 {dimension_numbers = #tpu.dot_dimension_numbers<[1], [0], [0], [1], [0, 0, 1, 1], [], []>} : vector<2x32xf32>, vector<32x128xf32>, vector<2x128xf32> -> vector<2x128xf32>
    %266 = arith.addf %265, %262 : vector<2x128xf32>
    %c0_83 = arith.constant 0 : index
    %c0_84 = arith.constant 0 : index
    %c0_85 = arith.constant 0 : index
    %267 = vector.load %arg10[%c0_83, %c0_84, %c0_85] : memref<8x2x128xf32, #tpu.memory_space<vmem>>, vector<1x2x128xf32>
    %268 = vector.shape_cast %267 : vector<1x2x128xf32> to vector<2x128xf32>
    %269 = vector.shape_cast %266 : vector<2x128xf32> to vector<1x2x128xf32>
    tpu.vector_store %arg10[%c0_83, %c0_84, %c0_85], %269 {strides = array<i32>} : memref<8x2x128xf32, #tpu.memory_space<vmem>>, vector<1x2x128xf32>,
    %c1_86 = arith.constant 1 : index
    %c0_87 = arith.constant 0 : index
    %c0_88 = arith.constant 0 : index
    %270 = vector.load %arg9[%c1_86, %c0_87, %c0_88] : memref<8x2x32xf32, #tpu.memory_space<vmem>>, vector<1x2x32xf32>
    %271 = vector.shape_cast %270 : vector<1x2x32xf32> to vector<2x32xf32>
    %cst_89 = arith.constant dense<0.000000e+00> : vector<2x128xf32>
    %272 = tpu.matmul %271, %259, %cst_89 {dimension_numbers = #tpu.dot_dimension_numbers<[1], [0], [0], [1], [0, 0, 1, 1], [], []>} : vector<2x32xf32>, vector<32x128xf32>, vector<2x128xf32> -> vector<2x128xf32>
    %273 = arith.addf %272, %262 : vector<2x128xf32>
    %c1_90 = arith.constant 1 : index
    %c0_91 = arith.constant 0 : index
    %c0_92 = arith.constant 0 : index
    %274 = vector.load %arg10[%c1_90, %c0_91, %c0_92] : memref<8x2x128xf32, #tpu.memory_space<vmem>>, vector<1x2x128xf32>
    %275 = vector.shape_cast %274 : vector<1x2x128xf32> to vector<2x128xf32>
    %276 = vector.shape_cast %273 : vector<2x128xf32> to vector<1x2x128xf32>
    tpu.vector_store %arg10[%c1_90, %c0_91, %c0_92], %276 {strides = array<i32>} : memref<8x2x128xf32, #tpu.memory_space<vmem>>, vector<1x2x128xf32>,
    %c2_93 = arith.constant 2 : index
    %c0_94 = arith.constant 0 : index
    %c0_95 = arith.constant 0 : index
    %277 = vector.load %arg9[%c2_93, %c0_94, %c0_95] : memref<8x2x32xf32, #tpu.memory_space<vmem>>, vector<1x2x32xf32>
    %278 = vector.shape_cast %277 : vector<1x2x32xf32> to vector<2x32xf32>
    %cst_96 = arith.constant dense<0.000000e+00> : vector<2x128xf32>
    %279 = tpu.matmul %278, %259, %cst_96 {dimension_numbers = #tpu.dot_dimension_numbers<[1], [0], [0], [1], [0, 0, 1, 1], [], []>} : vector<2x32xf32>, vector<32x128xf32>, vector<2x128xf32> -> vector<2x128xf32>
    %280 = arith.addf %279, %262 : vector<2x128xf32>
    %c2_97 = arith.constant 2 : index
    %c0_98 = arith.constant 0 : index
    %c0_99 = arith.constant 0 : index
    %281 = vector.load %arg10[%c2_97, %c0_98, %c0_99] : memref<8x2x128xf32, #tpu.memory_space<vmem>>, vector<1x2x128xf32>
    %282 = vector.shape_cast %281 : vector<1x2x128xf32> to vector<2x128xf32>
    %283 = vector.shape_cast %280 : vector<2x128xf32> to vector<1x2x128xf32>
    tpu.vector_store %arg10[%c2_97, %c0_98, %c0_99], %283 {strides = array<i32>} : memref<8x2x128xf32, #tpu.memory_space<vmem>>, vector<1x2x128xf32>,
    %c3_100 = arith.constant 3 : index
    %c0_101 = arith.constant 0 : index
    %c0_102 = arith.constant 0 : index
    %284 = vector.load %arg9[%c3_100, %c0_101, %c0_102] : memref<8x2x32xf32, #tpu.memory_space<vmem>>, vector<1x2x32xf32>
    %285 = vector.shape_cast %284 : vector<1x2x32xf32> to vector<2x32xf32>
    %cst_103 = arith.constant dense<0.000000e+00> : vector<2x128xf32>
    %286 = tpu.matmul %285, %259, %cst_103 {dimension_numbers = #tpu.dot_dimension_numbers<[1], [0], [0], [1], [0, 0, 1, 1], [], []>} : vector<2x32xf32>, vector<32x128xf32>, vector<2x128xf32> -> vector<2x128xf32>
    %287 = arith.addf %286, %262 : vector<2x128xf32>
    %c3_104 = arith.constant 3 : index
    %c0_105 = arith.constant 0 : index
    %c0_106 = arith.constant 0 : index
    %288 = vector.load %arg10[%c3_104, %c0_105, %c0_106] : memref<8x2x128xf32, #tpu.memory_space<vmem>>, vector<1x2x128xf32>
    %289 = vector.shape_cast %288 : vector<1x2x128xf32> to vector<2x128xf32>
    %290 = vector.shape_cast %287 : vector<2x128xf32> to vector<1x2x128xf32>
    tpu.vector_store %arg10[%c3_104, %c0_105, %c0_106], %290 {strides = array<i32>} : memref<8x2x128xf32, #tpu.memory_space<vmem>>, vector<1x2x128xf32>,
    %c4_107 = arith.constant 4 : index
    %c0_108 = arith.constant 0 : index
    %c0_109 = arith.constant 0 : index
    %291 = vector.load %arg9[%c4_107, %c0_108, %c0_109] : memref<8x2x32xf32, #tpu.memory_space<vmem>>, vector<1x2x32xf32>
    %292 = vector.shape_cast %291 : vector<1x2x32xf32> to vector<2x32xf32>
    %cst_110 = arith.constant dense<0.000000e+00> : vector<2x128xf32>
    %293 = tpu.matmul %292, %259, %cst_110 {dimension_numbers = #tpu.dot_dimension_numbers<[1], [0], [0], [1], [0, 0, 1, 1], [], []>} : vector<2x32xf32>, vector<32x128xf32>, vector<2x128xf32> -> vector<2x128xf32>
    %294 = arith.addf %293, %262 : vector<2x128xf32>
    %c4_111 = arith.constant 4 : index
    %c0_112 = arith.constant 0 : index
    %c0_113 = arith.constant 0 : index
    %295 = vector.load %arg10[%c4_111, %c0_112, %c0_113] : memref<8x2x128xf32, #tpu.memory_space<vmem>>, vector<1x2x128xf32>
    %296 = vector.shape_cast %295 : vector<1x2x128xf32> to vector<2x128xf32>
    %297 = vector.shape_cast %294 : vector<2x128xf32> to vector<1x2x128xf32>
    tpu.vector_store %arg10[%c4_111, %c0_112, %c0_113], %297 {strides = array<i32>} : memref<8x2x128xf32, #tpu.memory_space<vmem>>, vector<1x2x128xf32>,
    %c5_114 = arith.constant 5 : index
    %c0_115 = arith.constant 0 : index
    %c0_116 = arith.constant 0 : index
    %298 = vector.load %arg9[%c5_114, %c0_115, %c0_116] : memref<8x2x32xf32, #tpu.memory_space<vmem>>, vector<1x2x32xf32>
    %299 = vector.shape_cast %298 : vector<1x2x32xf32> to vector<2x32xf32>
    %cst_117 = arith.constant dense<0.000000e+00> : vector<2x128xf32>
    %300 = tpu.matmul %299, %259, %cst_117 {dimension_numbers = #tpu.dot_dimension_numbers<[1], [0], [0], [1], [0, 0, 1, 1], [], []>} : vector<2x32xf32>, vector<32x128xf32>, vector<2x128xf32> -> vector<2x128xf32>
    %301 = arith.addf %300, %262 : vector<2x128xf32>
    %c5_118 = arith.constant 5 : index
    %c0_119 = arith.constant 0 : index
    %c0_120 = arith.constant 0 : index
    %302 = vector.load %arg10[%c5_118, %c0_119, %c0_120] : memref<8x2x128xf32, #tpu.memory_space<vmem>>, vector<1x2x128xf32>
    %303 = vector.shape_cast %302 : vector<1x2x128xf32> to vector<2x128xf32>
    %304 = vector.shape_cast %301 : vector<2x128xf32> to vector<1x2x128xf32>
    tpu.vector_store %arg10[%c5_118, %c0_119, %c0_120], %304 {strides = array<i32>} : memref<8x2x128xf32, #tpu.memory_space<vmem>>, vector<1x2x128xf32>,
    %c6_121 = arith.constant 6 : index
    %c0_122 = arith.constant 0 : index
    %c0_123 = arith.constant 0 : index
    %305 = vector.load %arg9[%c6_121, %c0_122, %c0_123] : memref<8x2x32xf32, #tpu.memory_space<vmem>>, vector<1x2x32xf32>
    %306 = vector.shape_cast %305 : vector<1x2x32xf32> to vector<2x32xf32>
    %cst_124 = arith.constant dense<0.000000e+00> : vector<2x128xf32>
    %307 = tpu.matmul %306, %259, %cst_124 {dimension_numbers = #tpu.dot_dimension_numbers<[1], [0], [0], [1], [0, 0, 1, 1], [], []>} : vector<2x32xf32>, vector<32x128xf32>, vector<2x128xf32> -> vector<2x128xf32>
    %308 = arith.addf %307, %262 : vector<2x128xf32>
    %c6_125 = arith.constant 6 : index
    %c0_126 = arith.constant 0 : index
    %c0_127 = arith.constant 0 : index
    %309 = vector.load %arg10[%c6_125, %c0_126, %c0_127] : memref<8x2x128xf32, #tpu.memory_space<vmem>>, vector<1x2x128xf32>
    %310 = vector.shape_cast %309 : vector<1x2x128xf32> to vector<2x128xf32>
    %311 = vector.shape_cast %308 : vector<2x128xf32> to vector<1x2x128xf32>
    tpu.vector_store %arg10[%c6_125, %c0_126, %c0_127], %311 {strides = array<i32>} : memref<8x2x128xf32, #tpu.memory_space<vmem>>, vector<1x2x128xf32>,
    %c7_128 = arith.constant 7 : index
    %c0_129 = arith.constant 0 : index
    %c0_130 = arith.constant 0 : index
    %312 = vector.load %arg9[%c7_128, %c0_129, %c0_130] : memref<8x2x32xf32, #tpu.memory_space<vmem>>, vector<1x2x32xf32>
    %313 = vector.shape_cast %312 : vector<1x2x32xf32> to vector<2x32xf32>
    %cst_131 = arith.constant dense<0.000000e+00> : vector<2x128xf32>
    %314 = tpu.matmul %313, %259, %cst_131 {dimension_numbers = #tpu.dot_dimension_numbers<[1], [0], [0], [1], [0, 0, 1, 1], [], []>} : vector<2x32xf32>, vector<32x128xf32>, vector<2x128xf32> -> vector<2x128xf32>
    %315 = arith.addf %314, %262 : vector<2x128xf32>
    %c7_132 = arith.constant 7 : index
    %c0_133 = arith.constant 0 : index
    %c0_134 = arith.constant 0 : index
    %316 = vector.load %arg10[%c7_132, %c0_133, %c0_134] : memref<8x2x128xf32, #tpu.memory_space<vmem>>, vector<1x2x128xf32>
    %317 = vector.shape_cast %316 : vector<1x2x128xf32> to vector<2x128xf32>
    %318 = vector.shape_cast %315 : vector<2x128xf32> to vector<1x2x128xf32>
    tpu.vector_store %arg10[%c7_132, %c0_133, %c0_134], %318 {strides = array<i32>} : memref<8x2x128xf32, #tpu.memory_space<vmem>>, vector<1x2x128xf32>,
    %c0_135 = arith.constant 0 : index
    %c0_136 = arith.constant 0 : index
    %319 = vector.load %arg4[%c0_135, %c0_136] : memref<32x128xf32, #tpu.memory_space<vmem>>, vector<32x128xf32>
    %cst_137 = arith.constant 0.000000e+00 : f32
    %320 = vector.broadcast %cst_137 : f32 to vector<2x32xf32>
    %cst_138 = arith.constant 0.000000e+00 : f32
    %321 = vector.broadcast %cst_138 : f32 to vector<2x32xf32>
    %c0_139 = arith.constant 0 : index
    %c0_140 = arith.constant 0 : index
    %c0_141 = arith.constant 0 : index
    %322 = vector.load %arg10[%c0_139, %c0_140, %c0_141] : memref<8x2x128xf32, #tpu.memory_space<vmem>>, vector<1x2x128xf32>
    %323 = vector.shape_cast %322 : vector<1x2x128xf32> to vector<2x128xf32>
    %cst_142 = arith.constant dense<0.000000e+00> : vector<2x128xf32>
    %324 = tpu.matmul %320, %319, %cst_142 {dimension_numbers = #tpu.dot_dimension_numbers<[1], [0], [0], [1], [0, 0, 1, 1], [], []>} : vector<2x32xf32>, vector<32x128xf32>, vector<2x128xf32> -> vector<2x128xf32>
    %325 = arith.addf %323, %324 : vector<2x128xf32>
    %326 = vector.extract_strided_slice %325 {offsets = [0, 0], sizes = [2, 32], strides = [1, 1]} : vector<2x128xf32> to vector<2x32xf32>
    %327 = arith.negf %326 : vector<2x32xf32>
    %328 = math.exp %327 : vector<2x32xf32>
    %cst_143 = arith.constant 1.000000e+00 : f32
    %329 = vector.broadcast %cst_143 : f32 to vector<2x32xf32>
    %330 = arith.addf %329, %328 : vector<2x32xf32>
    %331 = arith.divf %329, %330 : vector<2x32xf32>
    %332 = vector.extract_strided_slice %325 {offsets = [0, 32], sizes = [2, 32], strides = [1, 1]} : vector<2x128xf32> to vector<2x32xf32>
    %333 = arith.negf %332 : vector<2x32xf32>
    %334 = math.exp %333 : vector<2x32xf32>
    %cst_144 = arith.constant 1.000000e+00 : f32
    %335 = vector.broadcast %cst_144 : f32 to vector<2x32xf32>
    %336 = arith.addf %335, %334 : vector<2x32xf32>
    %337 = arith.divf %335, %336 : vector<2x32xf32>
    %338 = vector.extract_strided_slice %325 {offsets = [0, 64], sizes = [2, 32], strides = [1, 1]} : vector<2x128xf32> to vector<2x32xf32>
    %339 = math.tanh %338 : vector<2x32xf32>
    %340 = vector.extract_strided_slice %325 {offsets = [0, 96], sizes = [2, 32], strides = [1, 1]} : vector<2x128xf32> to vector<2x32xf32>
    %341 = arith.negf %340 : vector<2x32xf32>
    %342 = math.exp %341 : vector<2x32xf32>
    %cst_145 = arith.constant 1.000000e+00 : f32
    %343 = vector.broadcast %cst_145 : f32 to vector<2x32xf32>
    %344 = arith.addf %343, %342 : vector<2x32xf32>
    %345 = arith.divf %343, %344 : vector<2x32xf32>
    %346 = arith.mulf %337, %321 : vector<2x32xf32>
    %347 = arith.mulf %331, %339 : vector<2x32xf32>
    %348 = arith.addf %346, %347 : vector<2x32xf32>
    %349 = math.tanh %348 : vector<2x32xf32>
    %350 = arith.mulf %345, %349 : vector<2x32xf32>
    %c1_146 = arith.constant 1 : index
    %c0_147 = arith.constant 0 : index
    %c0_148 = arith.constant 0 : index
    %351 = vector.load %arg10[%c1_146, %c0_147, %c0_148] : memref<8x2x128xf32, #tpu.memory_space<vmem>>, vector<1x2x128xf32>
    %352 = vector.shape_cast %351 : vector<1x2x128xf32> to vector<2x128xf32>
    %cst_149 = arith.constant dense<0.000000e+00> : vector<2x128xf32>
    %353 = tpu.matmul %350, %319, %cst_149 {dimension_numbers = #tpu.dot_dimension_numbers<[1], [0], [0], [1], [0, 0, 1, 1], [], []>} : vector<2x32xf32>, vector<32x128xf32>, vector<2x128xf32> -> vector<2x128xf32>
    %354 = arith.addf %352, %353 : vector<2x128xf32>
    %355 = vector.extract_strided_slice %354 {offsets = [0, 0], sizes = [2, 32], strides = [1, 1]} : vector<2x128xf32> to vector<2x32xf32>
    %356 = arith.negf %355 : vector<2x32xf32>
    %357 = math.exp %356 : vector<2x32xf32>
    %cst_150 = arith.constant 1.000000e+00 : f32
    %358 = vector.broadcast %cst_150 : f32 to vector<2x32xf32>
    %359 = arith.addf %358, %357 : vector<2x32xf32>
    %360 = arith.divf %358, %359 : vector<2x32xf32>
    %361 = vector.extract_strided_slice %354 {offsets = [0, 32], sizes = [2, 32], strides = [1, 1]} : vector<2x128xf32> to vector<2x32xf32>
    %362 = arith.negf %361 : vector<2x32xf32>
    %363 = math.exp %362 : vector<2x32xf32>
    %cst_151 = arith.constant 1.000000e+00 : f32
    %364 = vector.broadcast %cst_151 : f32 to vector<2x32xf32>
    %365 = arith.addf %364, %363 : vector<2x32xf32>
    %366 = arith.divf %364, %365 : vector<2x32xf32>
    %367 = vector.extract_strided_slice %354 {offsets = [0, 64], sizes = [2, 32], strides = [1, 1]} : vector<2x128xf32> to vector<2x32xf32>
    %368 = math.tanh %367 : vector<2x32xf32>
    %369 = vector.extract_strided_slice %354 {offsets = [0, 96], sizes = [2, 32], strides = [1, 1]} : vector<2x128xf32> to vector<2x32xf32>
    %370 = arith.negf %369 : vector<2x32xf32>
    %371 = math.exp %370 : vector<2x32xf32>
    %cst_152 = arith.constant 1.000000e+00 : f32
    %372 = vector.broadcast %cst_152 : f32 to vector<2x32xf32>
    %373 = arith.addf %372, %371 : vector<2x32xf32>
    %374 = arith.divf %372, %373 : vector<2x32xf32>
    %375 = arith.mulf %366, %348 : vector<2x32xf32>
    %376 = arith.mulf %360, %368 : vector<2x32xf32>
    %377 = arith.addf %375, %376 : vector<2x32xf32>
    %378 = math.tanh %377 : vector<2x32xf32>
    %379 = arith.mulf %374, %378 : vector<2x32xf32>
    %c2_153 = arith.constant 2 : index
    %c0_154 = arith.constant 0 : index
    %c0_155 = arith.constant 0 : index
    %380 = vector.load %arg10[%c2_153, %c0_154, %c0_155] : memref<8x2x128xf32, #tpu.memory_space<vmem>>, vector<1x2x128xf32>
    %381 = vector.shape_cast %380 : vector<1x2x128xf32> to vector<2x128xf32>
    %cst_156 = arith.constant dense<0.000000e+00> : vector<2x128xf32>
    %382 = tpu.matmul %379, %319, %cst_156 {dimension_numbers = #tpu.dot_dimension_numbers<[1], [0], [0], [1], [0, 0, 1, 1], [], []>} : vector<2x32xf32>, vector<32x128xf32>, vector<2x128xf32> -> vector<2x128xf32>
    %383 = arith.addf %381, %382 : vector<2x128xf32>
    %384 = vector.extract_strided_slice %383 {offsets = [0, 0], sizes = [2, 32], strides = [1, 1]} : vector<2x128xf32> to vector<2x32xf32>
    %385 = arith.negf %384 : vector<2x32xf32>
    %386 = math.exp %385 : vector<2x32xf32>
    %cst_157 = arith.constant 1.000000e+00 : f32
    %387 = vector.broadcast %cst_157 : f32 to vector<2x32xf32>
    %388 = arith.addf %387, %386 : vector<2x32xf32>
    %389 = arith.divf %387, %388 : vector<2x32xf32>
    %390 = vector.extract_strided_slice %383 {offsets = [0, 32], sizes = [2, 32], strides = [1, 1]} : vector<2x128xf32> to vector<2x32xf32>
    %391 = arith.negf %390 : vector<2x32xf32>
    %392 = math.exp %391 : vector<2x32xf32>
    %cst_158 = arith.constant 1.000000e+00 : f32
    %393 = vector.broadcast %cst_158 : f32 to vector<2x32xf32>
    %394 = arith.addf %393, %392 : vector<2x32xf32>
    %395 = arith.divf %393, %394 : vector<2x32xf32>
    %396 = vector.extract_strided_slice %383 {offsets = [0, 64], sizes = [2, 32], strides = [1, 1]} : vector<2x128xf32> to vector<2x32xf32>
    %397 = math.tanh %396 : vector<2x32xf32>
    %398 = vector.extract_strided_slice %383 {offsets = [0, 96], sizes = [2, 32], strides = [1, 1]} : vector<2x128xf32> to vector<2x32xf32>
    %399 = arith.negf %398 : vector<2x32xf32>
    %400 = math.exp %399 : vector<2x32xf32>
    %cst_159 = arith.constant 1.000000e+00 : f32
    %401 = vector.broadcast %cst_159 : f32 to vector<2x32xf32>
    %402 = arith.addf %401, %400 : vector<2x32xf32>
    %403 = arith.divf %401, %402 : vector<2x32xf32>
    %404 = arith.mulf %395, %377 : vector<2x32xf32>
    %405 = arith.mulf %389, %397 : vector<2x32xf32>
    %406 = arith.addf %404, %405 : vector<2x32xf32>
    %407 = math.tanh %406 : vector<2x32xf32>
    %408 = arith.mulf %403, %407 : vector<2x32xf32>
    %c3_160 = arith.constant 3 : index
    %c0_161 = arith.constant 0 : index
    %c0_162 = arith.constant 0 : index
    %409 = vector.load %arg10[%c3_160, %c0_161, %c0_162] : memref<8x2x128xf32, #tpu.memory_space<vmem>>, vector<1x2x128xf32>
    %410 = vector.shape_cast %409 : vector<1x2x128xf32> to vector<2x128xf32>
    %cst_163 = arith.constant dense<0.000000e+00> : vector<2x128xf32>
    %411 = tpu.matmul %408, %319, %cst_163 {dimension_numbers = #tpu.dot_dimension_numbers<[1], [0], [0], [1], [0, 0, 1, 1], [], []>} : vector<2x32xf32>, vector<32x128xf32>, vector<2x128xf32> -> vector<2x128xf32>
    %412 = arith.addf %410, %411 : vector<2x128xf32>
    %413 = vector.extract_strided_slice %412 {offsets = [0, 0], sizes = [2, 32], strides = [1, 1]} : vector<2x128xf32> to vector<2x32xf32>
    %414 = arith.negf %413 : vector<2x32xf32>
    %415 = math.exp %414 : vector<2x32xf32>
    %cst_164 = arith.constant 1.000000e+00 : f32
    %416 = vector.broadcast %cst_164 : f32 to vector<2x32xf32>
    %417 = arith.addf %416, %415 : vector<2x32xf32>
    %418 = arith.divf %416, %417 : vector<2x32xf32>
    %419 = vector.extract_strided_slice %412 {offsets = [0, 32], sizes = [2, 32], strides = [1, 1]} : vector<2x128xf32> to vector<2x32xf32>
    %420 = arith.negf %419 : vector<2x32xf32>
    %421 = math.exp %420 : vector<2x32xf32>
    %cst_165 = arith.constant 1.000000e+00 : f32
    %422 = vector.broadcast %cst_165 : f32 to vector<2x32xf32>
    %423 = arith.addf %422, %421 : vector<2x32xf32>
    %424 = arith.divf %422, %423 : vector<2x32xf32>
    %425 = vector.extract_strided_slice %412 {offsets = [0, 64], sizes = [2, 32], strides = [1, 1]} : vector<2x128xf32> to vector<2x32xf32>
    %426 = math.tanh %425 : vector<2x32xf32>
    %427 = vector.extract_strided_slice %412 {offsets = [0, 96], sizes = [2, 32], strides = [1, 1]} : vector<2x128xf32> to vector<2x32xf32>
    %428 = arith.negf %427 : vector<2x32xf32>
    %429 = math.exp %428 : vector<2x32xf32>
    %cst_166 = arith.constant 1.000000e+00 : f32
    %430 = vector.broadcast %cst_166 : f32 to vector<2x32xf32>
    %431 = arith.addf %430, %429 : vector<2x32xf32>
    %432 = arith.divf %430, %431 : vector<2x32xf32>
    %433 = arith.mulf %424, %406 : vector<2x32xf32>
    %434 = arith.mulf %418, %426 : vector<2x32xf32>
    %435 = arith.addf %433, %434 : vector<2x32xf32>
    %436 = math.tanh %435 : vector<2x32xf32>
    %437 = arith.mulf %432, %436 : vector<2x32xf32>
    %c4_167 = arith.constant 4 : index
    %c0_168 = arith.constant 0 : index
    %c0_169 = arith.constant 0 : index
    %438 = vector.load %arg10[%c4_167, %c0_168, %c0_169] : memref<8x2x128xf32, #tpu.memory_space<vmem>>, vector<1x2x128xf32>
    %439 = vector.shape_cast %438 : vector<1x2x128xf32> to vector<2x128xf32>
    %cst_170 = arith.constant dense<0.000000e+00> : vector<2x128xf32>
    %440 = tpu.matmul %437, %319, %cst_170 {dimension_numbers = #tpu.dot_dimension_numbers<[1], [0], [0], [1], [0, 0, 1, 1], [], []>} : vector<2x32xf32>, vector<32x128xf32>, vector<2x128xf32> -> vector<2x128xf32>
    %441 = arith.addf %439, %440 : vector<2x128xf32>
    %442 = vector.extract_strided_slice %441 {offsets = [0, 0], sizes = [2, 32], strides = [1, 1]} : vector<2x128xf32> to vector<2x32xf32>
    %443 = arith.negf %442 : vector<2x32xf32>
    %444 = math.exp %443 : vector<2x32xf32>
    %cst_171 = arith.constant 1.000000e+00 : f32
    %445 = vector.broadcast %cst_171 : f32 to vector<2x32xf32>
    %446 = arith.addf %445, %444 : vector<2x32xf32>
    %447 = arith.divf %445, %446 : vector<2x32xf32>
    %448 = vector.extract_strided_slice %441 {offsets = [0, 32], sizes = [2, 32], strides = [1, 1]} : vector<2x128xf32> to vector<2x32xf32>
    %449 = arith.negf %448 : vector<2x32xf32>
    %450 = math.exp %449 : vector<2x32xf32>
    %cst_172 = arith.constant 1.000000e+00 : f32
    %451 = vector.broadcast %cst_172 : f32 to vector<2x32xf32>
    %452 = arith.addf %451, %450 : vector<2x32xf32>
    %453 = arith.divf %451, %452 : vector<2x32xf32>
    %454 = vector.extract_strided_slice %441 {offsets = [0, 64], sizes = [2, 32], strides = [1, 1]} : vector<2x128xf32> to vector<2x32xf32>
    %455 = math.tanh %454 : vector<2x32xf32>
    %456 = vector.extract_strided_slice %441 {offsets = [0, 96], sizes = [2, 32], strides = [1, 1]} : vector<2x128xf32> to vector<2x32xf32>
    %457 = arith.negf %456 : vector<2x32xf32>
    %458 = math.exp %457 : vector<2x32xf32>
    %cst_173 = arith.constant 1.000000e+00 : f32
    %459 = vector.broadcast %cst_173 : f32 to vector<2x32xf32>
    %460 = arith.addf %459, %458 : vector<2x32xf32>
    %461 = arith.divf %459, %460 : vector<2x32xf32>
    %462 = arith.mulf %453, %435 : vector<2x32xf32>
    %463 = arith.mulf %447, %455 : vector<2x32xf32>
    %464 = arith.addf %462, %463 : vector<2x32xf32>
    %465 = math.tanh %464 : vector<2x32xf32>
    %466 = arith.mulf %461, %465 : vector<2x32xf32>
    %c5_174 = arith.constant 5 : index
    %c0_175 = arith.constant 0 : index
    %c0_176 = arith.constant 0 : index
    %467 = vector.load %arg10[%c5_174, %c0_175, %c0_176] : memref<8x2x128xf32, #tpu.memory_space<vmem>>, vector<1x2x128xf32>
    %468 = vector.shape_cast %467 : vector<1x2x128xf32> to vector<2x128xf32>
    %cst_177 = arith.constant dense<0.000000e+00> : vector<2x128xf32>
    %469 = tpu.matmul %466, %319, %cst_177 {dimension_numbers = #tpu.dot_dimension_numbers<[1], [0], [0], [1], [0, 0, 1, 1], [], []>} : vector<2x32xf32>, vector<32x128xf32>, vector<2x128xf32> -> vector<2x128xf32>
    %470 = arith.addf %468, %469 : vector<2x128xf32>
    %471 = vector.extract_strided_slice %470 {offsets = [0, 0], sizes = [2, 32], strides = [1, 1]} : vector<2x128xf32> to vector<2x32xf32>
    %472 = arith.negf %471 : vector<2x32xf32>
    %473 = math.exp %472 : vector<2x32xf32>
    %cst_178 = arith.constant 1.000000e+00 : f32
    %474 = vector.broadcast %cst_178 : f32 to vector<2x32xf32>
    %475 = arith.addf %474, %473 : vector<2x32xf32>
    %476 = arith.divf %474, %475 : vector<2x32xf32>
    %477 = vector.extract_strided_slice %470 {offsets = [0, 32], sizes = [2, 32], strides = [1, 1]} : vector<2x128xf32> to vector<2x32xf32>
    %478 = arith.negf %477 : vector<2x32xf32>
    %479 = math.exp %478 : vector<2x32xf32>
    %cst_179 = arith.constant 1.000000e+00 : f32
    %480 = vector.broadcast %cst_179 : f32 to vector<2x32xf32>
    %481 = arith.addf %480, %479 : vector<2x32xf32>
    %482 = arith.divf %480, %481 : vector<2x32xf32>
    %483 = vector.extract_strided_slice %470 {offsets = [0, 64], sizes = [2, 32], strides = [1, 1]} : vector<2x128xf32> to vector<2x32xf32>
    %484 = math.tanh %483 : vector<2x32xf32>
    %485 = vector.extract_strided_slice %470 {offsets = [0, 96], sizes = [2, 32], strides = [1, 1]} : vector<2x128xf32> to vector<2x32xf32>
    %486 = arith.negf %485 : vector<2x32xf32>
    %487 = math.exp %486 : vector<2x32xf32>
    %cst_180 = arith.constant 1.000000e+00 : f32
    %488 = vector.broadcast %cst_180 : f32 to vector<2x32xf32>
    %489 = arith.addf %488, %487 : vector<2x32xf32>
    %490 = arith.divf %488, %489 : vector<2x32xf32>
    %491 = arith.mulf %482, %464 : vector<2x32xf32>
    %492 = arith.mulf %476, %484 : vector<2x32xf32>
    %493 = arith.addf %491, %492 : vector<2x32xf32>
    %494 = math.tanh %493 : vector<2x32xf32>
    %495 = arith.mulf %490, %494 : vector<2x32xf32>
    %c6_181 = arith.constant 6 : index
    %c0_182 = arith.constant 0 : index
    %c0_183 = arith.constant 0 : index
    %496 = vector.load %arg10[%c6_181, %c0_182, %c0_183] : memref<8x2x128xf32, #tpu.memory_space<vmem>>, vector<1x2x128xf32>
    %497 = vector.shape_cast %496 : vector<1x2x128xf32> to vector<2x128xf32>
    %cst_184 = arith.constant dense<0.000000e+00> : vector<2x128xf32>
    %498 = tpu.matmul %495, %319, %cst_184 {dimension_numbers = #tpu.dot_dimension_numbers<[1], [0], [0], [1], [0, 0, 1, 1], [], []>} : vector<2x32xf32>, vector<32x128xf32>, vector<2x128xf32> -> vector<2x128xf32>
    %499 = arith.addf %497, %498 : vector<2x128xf32>
    %500 = vector.extract_strided_slice %499 {offsets = [0, 0], sizes = [2, 32], strides = [1, 1]} : vector<2x128xf32> to vector<2x32xf32>
    %501 = arith.negf %500 : vector<2x32xf32>
    %502 = math.exp %501 : vector<2x32xf32>
    %cst_185 = arith.constant 1.000000e+00 : f32
    %503 = vector.broadcast %cst_185 : f32 to vector<2x32xf32>
    %504 = arith.addf %503, %502 : vector<2x32xf32>
    %505 = arith.divf %503, %504 : vector<2x32xf32>
    %506 = vector.extract_strided_slice %499 {offsets = [0, 32], sizes = [2, 32], strides = [1, 1]} : vector<2x128xf32> to vector<2x32xf32>
    %507 = arith.negf %506 : vector<2x32xf32>
    %508 = math.exp %507 : vector<2x32xf32>
    %cst_186 = arith.constant 1.000000e+00 : f32
    %509 = vector.broadcast %cst_186 : f32 to vector<2x32xf32>
    %510 = arith.addf %509, %508 : vector<2x32xf32>
    %511 = arith.divf %509, %510 : vector<2x32xf32>
    %512 = vector.extract_strided_slice %499 {offsets = [0, 64], sizes = [2, 32], strides = [1, 1]} : vector<2x128xf32> to vector<2x32xf32>
    %513 = math.tanh %512 : vector<2x32xf32>
    %514 = vector.extract_strided_slice %499 {offsets = [0, 96], sizes = [2, 32], strides = [1, 1]} : vector<2x128xf32> to vector<2x32xf32>
    %515 = arith.negf %514 : vector<2x32xf32>
    %516 = math.exp %515 : vector<2x32xf32>
    %cst_187 = arith.constant 1.000000e+00 : f32
    %517 = vector.broadcast %cst_187 : f32 to vector<2x32xf32>
    %518 = arith.addf %517, %516 : vector<2x32xf32>
    %519 = arith.divf %517, %518 : vector<2x32xf32>
    %520 = arith.mulf %511, %493 : vector<2x32xf32>
    %521 = arith.mulf %505, %513 : vector<2x32xf32>
    %522 = arith.addf %520, %521 : vector<2x32xf32>
    %523 = math.tanh %522 : vector<2x32xf32>
    %524 = arith.mulf %519, %523 : vector<2x32xf32>
    %c7_188 = arith.constant 7 : index
    %c0_189 = arith.constant 0 : index
    %c0_190 = arith.constant 0 : index
    %525 = vector.load %arg10[%c7_188, %c0_189, %c0_190] : memref<8x2x128xf32, #tpu.memory_space<vmem>>, vector<1x2x128xf32>
    %526 = vector.shape_cast %525 : vector<1x2x128xf32> to vector<2x128xf32>
    %cst_191 = arith.constant dense<0.000000e+00> : vector<2x128xf32>
    %527 = tpu.matmul %524, %319, %cst_191 {dimension_numbers = #tpu.dot_dimension_numbers<[1], [0], [0], [1], [0, 0, 1, 1], [], []>} : vector<2x32xf32>, vector<32x128xf32>, vector<2x128xf32> -> vector<2x128xf32>
    %528 = arith.addf %526, %527 : vector<2x128xf32>
    %529 = vector.extract_strided_slice %528 {offsets = [0, 0], sizes = [2, 32], strides = [1, 1]} : vector<2x128xf32> to vector<2x32xf32>
    %530 = arith.negf %529 : vector<2x32xf32>
    %531 = math.exp %530 : vector<2x32xf32>
    %cst_192 = arith.constant 1.000000e+00 : f32
    %532 = vector.broadcast %cst_192 : f32 to vector<2x32xf32>
    %533 = arith.addf %532, %531 : vector<2x32xf32>
    %534 = arith.divf %532, %533 : vector<2x32xf32>
    %535 = vector.extract_strided_slice %528 {offsets = [0, 32], sizes = [2, 32], strides = [1, 1]} : vector<2x128xf32> to vector<2x32xf32>
    %536 = arith.negf %535 : vector<2x32xf32>
    %537 = math.exp %536 : vector<2x32xf32>
    %cst_193 = arith.constant 1.000000e+00 : f32
    %538 = vector.broadcast %cst_193 : f32 to vector<2x32xf32>
    %539 = arith.addf %538, %537 : vector<2x32xf32>
    %540 = arith.divf %538, %539 : vector<2x32xf32>
    %541 = vector.extract_strided_slice %528 {offsets = [0, 64], sizes = [2, 32], strides = [1, 1]} : vector<2x128xf32> to vector<2x32xf32>
    %542 = math.tanh %541 : vector<2x32xf32>
    %543 = vector.extract_strided_slice %528 {offsets = [0, 96], sizes = [2, 32], strides = [1, 1]} : vector<2x128xf32> to vector<2x32xf32>
    %544 = arith.negf %543 : vector<2x32xf32>
    %545 = math.exp %544 : vector<2x32xf32>
    %cst_194 = arith.constant 1.000000e+00 : f32
    %546 = vector.broadcast %cst_194 : f32 to vector<2x32xf32>
    %547 = arith.addf %546, %545 : vector<2x32xf32>
    %548 = arith.divf %546, %547 : vector<2x32xf32>
    %549 = arith.mulf %540, %522 : vector<2x32xf32>
    %550 = arith.mulf %534, %542 : vector<2x32xf32>
    %551 = arith.addf %549, %550 : vector<2x32xf32>
    %552 = math.tanh %551 : vector<2x32xf32>
    %553 = arith.mulf %548, %552 : vector<2x32xf32>
    %c0_195 = arith.constant 0 : index
    %c0_196 = arith.constant 0 : index
    %554 = vector.load %arg6[%c0_195, %c0_196] : memref<32x4xf32, #tpu.memory_space<vmem>>, vector<32x4xf32>
    %cst_197 = arith.constant dense<0.000000e+00> : vector<2x4xf32>
    %555 = tpu.matmul %553, %554, %cst_197 {dimension_numbers = #tpu.dot_dimension_numbers<[1], [0], [0], [1], [0, 0, 1, 1], [], []>} : vector<2x32xf32>, vector<32x4xf32>, vector<2x4xf32> -> vector<2x4xf32>
    %c0_198 = arith.constant 0 : index
    %c0_199 = arith.constant 0 : index
    %556 = vector.load %arg7[%c0_198, %c0_199] : memref<1x4xf32, #tpu.memory_space<vmem>>, vector<1x4xf32>
    %557 = vector.broadcast %556 : vector<1x4xf32> to vector<2x4xf32>
    %558 = arith.addf %555, %557 : vector<2x4xf32>
    %c0_200 = arith.constant 0 : index
    %c0_201 = arith.constant 0 : index
    %559 = vector.load %arg8[%c0_200, %c0_201] : memref<2x4xf32, #tpu.memory_space<vmem>>, vector<2x4xf32>
    tpu.vector_store %arg8[%c0_200, %c0_201], %558 {strides = array<i32>} : memref<2x4xf32, #tpu.memory_space<vmem>>, vector<2x4xf32>,
    return
  }
  func.func @transform_0(%arg0: i32) -> (i32, i32, i32) {
    %c0_i32 = arith.constant 0 : i32
    %c0_i32_0 = arith.constant 0 : i32
    %c0_i32_1 = arith.constant 0 : i32
    %c0_i32_2 = arith.constant 0 : i32
    return %c0_i32, %c0_i32_0, %c0_i32_1 : i32, i32, i32
  }
  func.func @transform_1(%arg0: i32) -> (i32, i32) {
    %c0_i32 = arith.constant 0 : i32
    %c0_i32_0 = arith.constant 0 : i32
    %c0_i32_1 = arith.constant 0 : i32
    return %c0_i32, %c0_i32_0 : i32, i32
  }
  func.func @transform_2(%arg0: i32) -> (i32, i32) {
    %c0_i32 = arith.constant 0 : i32
    %c0_i32_0 = arith.constant 0 : i32
    %c0_i32_1 = arith.constant 0 : i32
    return %c0_i32, %c0_i32_0 : i32, i32
  }
  func.func @transform_3(%arg0: i32) -> (i32, i32) {
    %c0_i32 = arith.constant 0 : i32
    %c0_i32_0 = arith.constant 0 : i32
    %c0_i32_1 = arith.constant 0 : i32
    return %c0_i32, %c0_i32_0 : i32, i32
  }
  func.func @transform_4(%arg0: i32) -> (i32, i32) {
    %c0_i32 = arith.constant 0 : i32
    %c0_i32_0 = arith.constant 0 : i32
    %c0_i32_1 = arith.constant 0 : i32
    return %c0_i32, %c0_i32_0 : i32, i32
  }
  func.func @transform_5(%arg0: i32) -> (i32, i32) {
    %c0_i32 = arith.constant 0 : i32
    %c0_i32_0 = arith.constant 0 : i32
    %c0_i32_1 = arith.constant 0 : i32
    return %c0_i32, %c0_i32_0 : i32, i32
  }
  func.func @transform_6(%arg0: i32) -> (i32, i32) {
    %c0_i32 = arith.constant 0 : i32
    %c0_i32_0 = arith.constant 0 : i32
    %c0_i32_1 = arith.constant 0 : i32
    return %c0_i32, %c0_i32_0 : i32, i32
  }
  func.func @transform_7(%arg0: i32) -> (i32, i32) {
    %c0_i32 = arith.constant 0 : i32
    %c0_i32_0 = arith.constant 0 : i32
    %c0_i32_1 = arith.constant 0 : i32
    return %c0_i32, %c0_i32_0 : i32, i32
  }
}

</mosaic_0001>

<llo_original>
// kernel: lstm_model_forward.1
$region0: #{lstm_model_forward.1}
  #allocation0 [shape = 'u32[]', space=smem, size = 0x4, offset = 0x4, fixed_abs, tag = 'smem constant byte address 0x4 - core index']
  #allocation1 [shape = 'u32[72,128]{1,0:T(1,128)}', space=vmem, size = 0x9000, scoped, tag = 'internal scratch']
  #allocation2 [shape = 'f32[8,2,32]{2,1,0:T(2,128)}', space=vmem, size = 0x2000, scoped, tag = 'scratch operand']
  #allocation3 [shape = 'f32[8,2,128]{2,1,0:T(2,128)}', space=vmem, size = 0x2000, scoped, tag = 'scratch operand']
  %s0 = inlined_call_operand.vmem [shape: f32[8,2,128], index: 0, kind: input, shape index: {}]
  %s1 = inlined_call_operand.vmem [shape: f32[32,128], index: 1, kind: input, shape index: {}]
  %s2 = inlined_call_operand.vmem [shape: f32[32,128], index: 2, kind: input, shape index: {}]
  %s3 = inlined_call_operand.vmem [shape: f32[32,128], index: 3, kind: input, shape index: {}]
  %s4 = inlined_call_operand.vmem [shape: f32[1,128], index: 4, kind: input, shape index: {}]
  %s5 = inlined_call_operand.vmem [shape: f32[32,4], index: 5, kind: input, shape index: {}]
  %s6 = inlined_call_operand.vmem [shape: f32[1,4], index: 6, kind: input, shape index: {}]
  %s7 = inlined_call_operand.hbm [shape: f32[2,4], index: 7, kind: output, shape index: {}]
  %s8 = sld [smem:[#allocation0]]
  $region38: #{lstm_model_forward.1} parent=0
    _
  %s10 = ssub.s32 1, %s8
  %s11 = scalar_select 0, %s10, %s8
  $region1: #{lstm_model_forward.1} parent=0
    #allocation4 [shape = 'u8[1024]{0}', space=vmem, size = 0x400, scoped, tag = 'output window, operand 0, single buffered']
    #allocation5 [shape = 's32[1]{0}', space=sflag, size = 0x4, scoped, tag = 'scoped memory for lstm_model_forward.1']
    %12 = vsyncpa [#allocation5], 0
    // Predicated region
    $region2: #{lstm_model_forward.1} parent=1 // pred_check
      _
    $region3: #{lstm_model_forward.1} parent=1 // pred_check_branch
      %14 = sbr.rel (0) target = $region5
    $region4: #{lstm_model_forward.1} parent=1 // pred_region
      _
    $region5: #{lstm_model_forward.1} parent=1 // pred_fallthru
      _
    // Predicated region
    $region6: #{lstm_model_forward.1} parent=1 // pred_check
      _
    $region7: #{lstm_model_forward.1} parent=1 // pred_check_branch
      %16 = sbr.rel (0) target = $region9
    $region8: #{lstm_model_forward.1} parent=1 // pred_region
      _
    $region9: #{lstm_model_forward.1} parent=1 // pred_fallthru
      _
    // Predicated region
    $region10: #{lstm_model_forward.1} parent=1 // pred_check
      _
    $region11: #{lstm_model_forward.1} parent=1 // pred_check_branch
      %18 = sbr.rel (0) target = $region13
    $region12: #{lstm_model_forward.1} parent=1 // pred_region
      _
    $region13: #{lstm_model_forward.1} parent=1 // pred_fallthru
      _
    // Predicated region
    $region14: #{lstm_model_forward.1} parent=1 // pred_check
      _
    $region15: #{lstm_model_forward.1} parent=1 // pred_check_branch
      %20 = sbr.rel (0) target = $region17
    $region16: #{lstm_model_forward.1} parent=1 // pred_region
      _
    $region17: #{lstm_model_forward.1} parent=1 // pred_fallthru
      _
    // Predicated region
    $region18: #{lstm_model_forward.1} parent=1 // pred_check
      _
    $region19: #{lstm_model_forward.1} parent=1 // pred_check_branch
      %22 = sbr.rel (0) target = $region21
    $region20: #{lstm_model_forward.1} parent=1 // pred_region
      _
    $region21: #{lstm_model_forward.1} parent=1 // pred_fallthru
      _
    // Predicated region
    $region22: #{lstm_model_forward.1} parent=1 // pred_check
      _
    $region23: #{lstm_model_forward.1} parent=1 // pred_check_branch
      %24 = sbr.rel (0) target = $region25
    $region24: #{lstm_model_forward.1} parent=1 // pred_region
      _
    $region25: #{lstm_model_forward.1} parent=1 // pred_fallthru
      _
    // Predicated region
    $region26: #{lstm_model_forward.1} parent=1 // pred_check
      _
    $region27: #{lstm_model_forward.1} parent=1 // pred_check_branch
      %26 = sbr.rel (0) target = $region29
    $region28: #{lstm_model_forward.1} parent=1 // pred_region
      _
    $region29: #{lstm_model_forward.1} parent=1 // pred_fallthru
      _
    %v27 = vld [vmem:[%s1] sm:$0xff]
    %v28 = vld [vmem:[%s1 + $0x8] sm:$0xff]
    %v29 = vld [vmem:[%s1 + $0x10] sm:$0xff]
    %v30 = vld [vmem:[%s1 + $0x18] sm:$0xff]
    %v31 = vld [vmem:[%s0] sm:$0x3]
    %vm32 = vcmask 261120
    %v34 = vsel %vm32, 0.0, 0
    %36 = vmatpush.msra.mxu0 0.0
    %37 = vmatpush.msra.mxu0 0.0
    %38 = vmatpush.msra.mxu0 0.0
    %39 = vmatpush.msra.mxu0 0.0
    %40 = vmatpush.msra.mxu0 0.0
    %41 = vmatpush.msra.mxu0 0.0
    %42 = vmatpush.msra.mxu0 0.0
    %43 = vmatpush.msra.mxu0 0.0
    %44 = vmatpush.msra.mxu0 0.0
    %45 = vmatpush.msra.mxu0 0.0
    %46 = vmatpush.msra.mxu0 0.0
    %47 = vmatpush.msra.mxu0 0.0
    %48 = vmatpush.msra.mxu0 %v30
    %49 = vmatpush.msra.mxu0 %v29
    %50 = vmatpush.msra.mxu0 %v28
    %51 = vmatpush.msra.mxu0 %v27
    %52 = vmatmul.f32.gmra.mxu0 %v34
    %v53 = vpop.f32.mrf.mxu0
    %v54 = vadd.f32 0.0, %v53
    %55 = vdwg.mxu0
    %v56 = vadd.f32 %v31, %v54
    %v57 = vxor.u32 %v56, 2147483648
    %v58 = vmul.f32 %v57, 1.442695
    %v59 = vpow.pop %v58
    %v60 = vadd.f32 %v59, 1.0
    %v61 = vrcp.pop %v60
    %v62 = vmul.f32 %v60, %v61
    %v63 = vsub.f32 1.0, %v62
    %v64 = vmul.f32 %v61, %v63
    %v65 = vadd.f32 %v61, %v64
    %vm66 = vweird.f32 %v60
    %vm67 = vweird.f32 %v61
    %vm68 = vmor %vm66, %vm67
    %v69 = vsel %vm68, %v61, %v65
    %v70 = vand.u32 2147483647, %v60
    %vm71 = vcmp.eq.f32.partialorder %v70, 8.507059e+37
    %v72 = vand.u32 %v60, 2147483648
    %v73 = vor.u32 1.1754944e-38, %v72
    %v74 = vsel %vm71, %v73, %v69
    %v75 = vmul.f32 1.0, %v74
    %v76 = vtanh.pop %v56
    %v77 = vmul.f32 %v75, 0.0
    %79 = vrot.lane.b32.xlu0 %v76, 64
    %v80 = vpop.permute.xlu0 %79
    %v82 = vmul.f32 %v75, %v80
    %84 = vrot.lane.b32.xlu0 %v82, 32
    %v85 = vpop.permute.xlu0 %84
    %v87 = vadd.f32 %v77, %v85
    %v88 = vtanh.pop %v87
    %90 = vrot.lane.b32.xlu0 %v88, 64
    %v91 = vpop.permute.xlu0 %90
    %v93 = vmul.f32 %v75, %v91
    %95 = vrot.lane.b32.xlu0 %v93, 32
    %v96 = vpop.permute.xlu0 %95
    %vm98 = vcmask 254976
    %99 = vst.msk [vmem:[#allocation2] sm:$0x3] %vm98, %v96
    %s100 = scalar_lea.vmem %s0, 2
    %v101 = vld [vmem:[%s100] sm:$0x3]
    %v102 = vsel %vm32, %v96, 0
    %104 = vmatpush.msra.mxu0 0.0
    %105 = vmatpush.msra.mxu0 0.0
    %106 = vmatpush.msra.mxu0 0.0
    %107 = vmatpush.msra.mxu0 0.0
    %108 = vmatpush.msra.mxu0 0.0
    %109 = vmatpush.msra.mxu0 0.0
    %110 = vmatpush.msra.mxu0 0.0
    %111 = vmatpush.msra.mxu0 0.0
    %112 = vmatpush.msra.mxu0 0.0
    %113 = vmatpush.msra.mxu0 0.0
    %114 = vmatpush.msra.mxu0 0.0
    %115 = vmatpush.msra.mxu0 0.0
    %116 = vmatpush.msra.mxu0 %v30
    %117 = vmatpush.msra.mxu0 %v29
    %118 = vmatpush.msra.mxu0 %v28
    %119 = vmatpush.msra.mxu0 %v27
    %120 = vmatmul.f32.gmra.mxu0 %v102
    %v121 = vpop.f32.mrf.mxu0
    %v122 = vadd.f32 0.0, %v121
    %123 = vdwg.mxu0
    %v124 = vadd.f32 %v101, %v122
    %v125 = vxor.u32 %v124, 2147483648
    %v126 = vmul.f32 %v125, 1.442695
    %v127 = vpow.pop %v126
    %v128 = vadd.f32 %v127, 1.0
    %v129 = vrcp.pop %v128
    %v130 = vmul.f32 %v128, %v129
    %v131 = vsub.f32 1.0, %v130
    %v132 = vmul.f32 %v129, %v131
    %v133 = vadd.f32 %v129, %v132
    %vm134 = vweird.f32 %v128
    %vm135 = vweird.f32 %v129
    %vm136 = vmor %vm134, %vm135
    %v137 = vsel %vm136, %v129, %v133
    %v138 = vand.u32 2147483647, %v128
    %vm139 = vcmp.eq.f32.partialorder %v138, 8.507059e+37
    %v140 = vand.u32 %v128, 2147483648
    %v141 = vor.u32 1.1754944e-38, %v140
    %v142 = vsel %vm139, %v141, %v137
    %v143 = vmul.f32 1.0, %v142
    %v144 = vtanh.pop %v124
    %v145 = vmul.f32 %v143, %v87
    %147 = vrot.lane.b32.xlu0 %v144, 64
    %v148 = vpop.permute.xlu0 %147
    %v150 = vmul.f32 %v143, %v148
    %152 = vrot.lane.b32.xlu0 %v150, 32
    %v153 = vpop.permute.xlu0 %152
    %v155 = vadd.f32 %v145, %v153
    %v156 = vtanh.pop %v155
    %158 = vrot.lane.b32.xlu0 %v156, 64
    %v159 = vpop.permute.xlu0 %158
    %v161 = vmul.f32 %v143, %v159
    %163 = vrot.lane.b32.xlu0 %v161, 32
    %v164 = vpop.permute.xlu0 %163
    %s166 = scalar_lea.vmem [#allocation2], 2
    %167 = vst.msk [vmem:[%s166] sm:$0x3] %vm98, %v164
    %s168 = scalar_lea.vmem %s0, 4
    %v169 = vld [vmem:[%s168] sm:$0x3]
    %v170 = vsel %vm32, %v164, 0
    %172 = vmatpush.msra.mxu0 0.0
    %173 = vmatpush.msra.mxu0 0.0
    %174 = vmatpush.msra.mxu0 0.0
    %175 = vmatpush.msra.mxu0 0.0
    %176 = vmatpush.msra.mxu0 0.0
    %177 = vmatpush.msra.mxu0 0.0
    %178 = vmatpush.msra.mxu0 0.0
    %179 = vmatpush.msra.mxu0 0.0
    %180 = vmatpush.msra.mxu0 0.0
    %181 = vmatpush.msra.mxu0 0.0
    %182 = vmatpush.msra.mxu0 0.0
    %183 = vmatpush.msra.mxu0 0.0
    %184 = vmatpush.msra.mxu0 %v30
    %185 = vmatpush.msra.mxu0 %v29
    %186 = vmatpush.msra.mxu0 %v28
    %187 = vmatpush.msra.mxu0 %v27
    %188 = vmatmul.f32.gmra.mxu0 %v170
    %v189 = vpop.f32.mrf.mxu0
    %v190 = vadd.f32 0.0, %v189
    %191 = vdwg.mxu0
    %v192 = vadd.f32 %v169, %v190
    %v193 = vxor.u32 %v192, 2147483648
    %v194 = vmul.f32 %v193, 1.442695
    %v195 = vpow.pop %v194
    %v196 = vadd.f32 %v195, 1.0
    %v197 = vrcp.pop %v196
    %v198 = vmul.f32 %v196, %v197
    %v199 = vsub.f32 1.0, %v198
    %v200 = vmul.f32 %v197, %v199
    %v201 = vadd.f32 %v197, %v200
    %vm202 = vweird.f32 %v196
    %vm203 = vweird.f32 %v197
    %vm204 = vmor %vm202, %vm203
    %v205 = vsel %vm204, %v197, %v201
    %v206 = vand.u32 2147483647, %v196
    %vm207 = vcmp.eq.f32.partialorder %v206, 8.507059e+37
    %v208 = vand.u32 %v196, 2147483648
    %v209 = vor.u32 1.1754944e-38, %v208
    %v210 = vsel %vm207, %v209, %v205
    %v211 = vmul.f32 1.0, %v210
    %v212 = vtanh.pop %v192
    %v213 = vmul.f32 %v211, %v155
    %215 = vrot.lane.b32.xlu0 %v212, 64
    %v216 = vpop.permute.xlu0 %215
    %v218 = vmul.f32 %v211, %v216
    %220 = vrot.lane.b32.xlu0 %v218, 32
    %v221 = vpop.permute.xlu0 %220
    %v223 = vadd.f32 %v213, %v221
    %v224 = vtanh.pop %v223
    %226 = vrot.lane.b32.xlu0 %v224, 64
    %v227 = vpop.permute.xlu0 %226
    %v229 = vmul.f32 %v211, %v227
    %231 = vrot.lane.b32.xlu0 %v229, 32
    %v232 = vpop.permute.xlu0 %231
    %s234 = scalar_lea.vmem [#allocation2], 4
    %235 = vst.msk [vmem:[%s234] sm:$0x3] %vm98, %v232
    %s236 = scalar_lea.vmem %s0, 6
    %v237 = vld [vmem:[%s236] sm:$0x3]
    %v238 = vsel %vm32, %v232, 0
    %240 = vmatpush.msra.mxu0 0.0
    %241 = vmatpush.msra.mxu0 0.0
    %242 = vmatpush.msra.mxu0 0.0
    %243 = vmatpush.msra.mxu0 0.0
    %244 = vmatpush.msra.mxu0 0.0
    %245 = vmatpush.msra.mxu0 0.0
    %246 = vmatpush.msra.mxu0 0.0
    %247 = vmatpush.msra.mxu0 0.0
    %248 = vmatpush.msra.mxu0 0.0
    %249 = vmatpush.msra.mxu0 0.0
    %250 = vmatpush.msra.mxu0 0.0
    %251 = vmatpush.msra.mxu0 0.0
    %252 = vmatpush.msra.mxu0 %v30
    %253 = vmatpush.msra.mxu0 %v29
    %254 = vmatpush.msra.mxu0 %v28
    %255 = vmatpush.msra.mxu0 %v27
    %256 = vmatmul.f32.gmra.mxu0 %v238
    %v257 = vpop.f32.mrf.mxu0
    %v258 = vadd.f32 0.0, %v257
    %259 = vdwg.mxu0
    %v260 = vadd.f32 %v237, %v258
    %v261 = vxor.u32 %v260, 2147483648
    %v262 = vmul.f32 %v261, 1.442695
    %v263 = vpow.pop %v262
    %v264 = vadd.f32 %v263, 1.0
    %v265 = vrcp.pop %v264
    %v266 = vmul.f32 %v264, %v265
    %v267 = vsub.f32 1.0, %v266
    %v268 = vmul.f32 %v265, %v267
    %v269 = vadd.f32 %v265, %v268
    %vm270 = vweird.f32 %v264
    %vm271 = vweird.f32 %v265
    %vm272 = vmor %vm270, %vm271
    %v273 = vsel %vm272, %v265, %v269
    %v274 = vand.u32 2147483647, %v264
    %vm275 = vcmp.eq.f32.partialorder %v274, 8.507059e+37
    %v276 = vand.u32 %v264, 2147483648
    %v277 = vor.u32 1.1754944e-38, %v276
    %v278 = vsel %vm275, %v277, %v273
    %v279 = vmul.f32 1.0, %v278
    %v280 = vtanh.pop %v260
    %v281 = vmul.f32 %v279, %v223
    %283 = vrot.lane.b32.xlu0 %v280, 64
    %v284 = vpop.permute.xlu0 %283
    %v286 = vmul.f32 %v279, %v284
    %288 = vrot.lane.b32.xlu0 %v286, 32
    %v289 = vpop.permute.xlu0 %288
    %v291 = vadd.f32 %v281, %v289
    %v292 = vtanh.pop %v291
    %294 = vrot.lane.b32.xlu0 %v292, 64
    %v295 = vpop.permute.xlu0 %294
    %v297 = vmul.f32 %v279, %v295
    %299 = vrot.lane.b32.xlu0 %v297, 32
    %v300 = vpop.permute.xlu0 %299
    %s302 = scalar_lea.vmem [#allocation2], 6
    %303 = vst.msk [vmem:[%s302] sm:$0x3] %vm98, %v300
    %s304 = scalar_lea.vmem %s0, 8
    %v305 = vld [vmem:[%s304] sm:$0x3]
    %v306 = vsel %vm32, %v300, 0
    %308 = vmatpush.msra.mxu0 0.0
    %309 = vmatpush.msra.mxu0 0.0
    %310 = vmatpush.msra.mxu0 0.0
    %311 = vmatpush.msra.mxu0 0.0
    %312 = vmatpush.msra.mxu0 0.0
    %313 = vmatpush.msra.mxu0 0.0
    %314 = vmatpush.msra.mxu0 0.0
    %315 = vmatpush.msra.mxu0 0.0
    %316 = vmatpush.msra.mxu0 0.0
    %317 = vmatpush.msra.mxu0 0.0
    %318 = vmatpush.msra.mxu0 0.0
    %319 = vmatpush.msra.mxu0 0.0
    %320 = vmatpush.msra.mxu0 %v30
    %321 = vmatpush.msra.mxu0 %v29
    %322 = vmatpush.msra.mxu0 %v28
    %323 = vmatpush.msra.mxu0 %v27
    %324 = vmatmul.f32.gmra.mxu0 %v306
    %v325 = vpop.f32.mrf.mxu0
    %v326 = vadd.f32 0.0, %v325
    %327 = vdwg.mxu0
    %v328 = vadd.f32 %v305, %v326
    %v329 = vxor.u32 %v328, 2147483648
    %v330 = vmul.f32 %v329, 1.442695
    %v331 = vpow.pop %v330
    %v332 = vadd.f32 %v331, 1.0
    %v333 = vrcp.pop %v332
    %v334 = vmul.f32 %v332, %v333
    %v335 = vsub.f32 1.0, %v334
    %v336 = vmul.f32 %v333, %v335
    %v337 = vadd.f32 %v333, %v336
    %vm338 = vweird.f32 %v332
    %vm339 = vweird.f32 %v333
    %vm340 = vmor %vm338, %vm339
    %v341 = vsel %vm340, %v333, %v337
    %v342 = vand.u32 2147483647, %v332
    %vm343 = vcmp.eq.f32.partialorder %v342, 8.507059e+37
    %v344 = vand.u32 %v332, 2147483648
    %v345 = vor.u32 1.1754944e-38, %v344
    %v346 = vsel %vm343, %v345, %v341
    %v347 = vmul.f32 1.0, %v346
    %v348 = vtanh.pop %v328
    %v349 = vmul.f32 %v347, %v291
    %351 = vrot.lane.b32.xlu0 %v348, 64
    %v352 = vpop.permute.xlu0 %351
    %v354 = vmul.f32 %v347, %v352
    %356 = vrot.lane.b32.xlu0 %v354, 32
    %v357 = vpop.permute.xlu0 %356
    %v359 = vadd.f32 %v349, %v357
    %v360 = vtanh.pop %v359
    %362 = vrot.lane.b32.xlu0 %v360, 64
    %v363 = vpop.permute.xlu0 %362
    %v365 = vmul.f32 %v347, %v363
    %367 = vrot.lane.b32.xlu0 %v365, 32
    %v368 = vpop.permute.xlu0 %367
    %s370 = scalar_lea.vmem [#allocation2], 8
    %371 = vst.msk [vmem:[%s370] sm:$0x3] %vm98, %v368
    %s372 = scalar_lea.vmem %s0, 10
    %v373 = vld [vmem:[%s372] sm:$0x3]
    %v374 = vsel %vm32, %v368, 0
    %376 = vmatpush.msra.mxu0 0.0
    %377 = vmatpush.msra.mxu0 0.0
    %378 = vmatpush.msra.mxu0 0.0
    %379 = vmatpush.msra.mxu0 0.0
    %380 = vmatpush.msra.mxu0 0.0
    %381 = vmatpush.msra.mxu0 0.0
    %382 = vmatpush.msra.mxu0 0.0
    %383 = vmatpush.msra.mxu0 0.0
    %384 = vmatpush.msra.mxu0 0.0
    %385 = vmatpush.msra.mxu0 0.0
    %386 = vmatpush.msra.mxu0 0.0
    %387 = vmatpush.msra.mxu0 0.0
    %388 = vmatpush.msra.mxu0 %v30
    %389 = vmatpush.msra.mxu0 %v29
    %390 = vmatpush.msra.mxu0 %v28
    %391 = vmatpush.msra.mxu0 %v27
    %392 = vmatmul.f32.gmra.mxu0 %v374
    %v393 = vpop.f32.mrf.mxu0
    %v394 = vadd.f32 0.0, %v393
    %395 = vdwg.mxu0
    %v396 = vadd.f32 %v373, %v394
    %v397 = vxor.u32 %v396, 2147483648
    %v398 = vmul.f32 %v397, 1.442695
    %v399 = vpow.pop %v398
    %v400 = vadd.f32 %v399, 1.0
    %v401 = vrcp.pop %v400
    %v402 = vmul.f32 %v400, %v401
    %v403 = vsub.f32 1.0, %v402
    %v404 = vmul.f32 %v401, %v403
    %v405 = vadd.f32 %v401, %v404
    %vm406 = vweird.f32 %v400
    %vm407 = vweird.f32 %v401
    %vm408 = vmor %vm406, %vm407
    %v409 = vsel %vm408, %v401, %v405
    %v410 = vand.u32 2147483647, %v400
    %vm411 = vcmp.eq.f32.partialorder %v410, 8.507059e+37
    %v412 = vand.u32 %v400, 2147483648
    %v413 = vor.u32 1.1754944e-38, %v412
    %v414 = vsel %vm411, %v413, %v409
    %v415 = vmul.f32 1.0, %v414
    %v416 = vtanh.pop %v396
    %v417 = vmul.f32 %v415, %v359
    %419 = vrot.lane.b32.xlu0 %v416, 64
    %v420 = vpop.permute.xlu0 %419
    %v422 = vmul.f32 %v415, %v420
    %424 = vrot.lane.b32.xlu0 %v422, 32
    %v425 = vpop.permute.xlu0 %424
    %v427 = vadd.f32 %v417, %v425
    %v428 = vtanh.pop %v427
    %430 = vrot.lane.b32.xlu0 %v428, 64
    %v431 = vpop.permute.xlu0 %430
    %v433 = vmul.f32 %v415, %v431
    %435 = vrot.lane.b32.xlu0 %v433, 32
    %v436 = vpop.permute.xlu0 %435
    %s438 = scalar_lea.vmem [#allocation2], 10
    %439 = vst.msk [vmem:[%s438] sm:$0x3] %vm98, %v436
    %s440 = scalar_lea.vmem %s0, 12
    %v441 = vld [vmem:[%s440] sm:$0x3]
    %v442 = vsel %vm32, %v436, 0
    %444 = vmatpush.msra.mxu0 0.0
    %445 = vmatpush.msra.mxu0 0.0
    %446 = vmatpush.msra.mxu0 0.0
    %447 = vmatpush.msra.mxu0 0.0
    %448 = vmatpush.msra.mxu0 0.0
    %449 = vmatpush.msra.mxu0 0.0
    %450 = vmatpush.msra.mxu0 0.0
    %451 = vmatpush.msra.mxu0 0.0
    %452 = vmatpush.msra.mxu0 0.0
    %453 = vmatpush.msra.mxu0 0.0
    %454 = vmatpush.msra.mxu0 0.0
    %455 = vmatpush.msra.mxu0 0.0
    %456 = vmatpush.msra.mxu0 %v30
    %457 = vmatpush.msra.mxu0 %v29
    %458 = vmatpush.msra.mxu0 %v28
    %459 = vmatpush.msra.mxu0 %v27
    %460 = vmatmul.f32.gmra.mxu0 %v442
    %v461 = vpop.f32.mrf.mxu0
    %v462 = vadd.f32 0.0, %v461
    %463 = vdwg.mxu0
    %v464 = vadd.f32 %v441, %v462
    %v465 = vxor.u32 %v464, 2147483648
    %v466 = vmul.f32 %v465, 1.442695
    %v467 = vpow.pop %v466
    %v468 = vadd.f32 %v467, 1.0
    %v469 = vrcp.pop %v468
    %v470 = vmul.f32 %v468, %v469
    %v471 = vsub.f32 1.0, %v470
    %v472 = vmul.f32 %v469, %v471
    %v473 = vadd.f32 %v469, %v472
    %vm474 = vweird.f32 %v468
    %vm475 = vweird.f32 %v469
    %vm476 = vmor %vm474, %vm475
    %v477 = vsel %vm476, %v469, %v473
    %v478 = vand.u32 2147483647, %v468
    %vm479 = vcmp.eq.f32.partialorder %v478, 8.507059e+37
    %v480 = vand.u32 %v468, 2147483648
    %v481 = vor.u32 1.1754944e-38, %v480
    %v482 = vsel %vm479, %v481, %v477
    %v483 = vmul.f32 1.0, %v482
    %v484 = vtanh.pop %v464
    %v485 = vmul.f32 %v483, %v427
    %487 = vrot.lane.b32.xlu0 %v484, 64
    %v488 = vpop.permute.xlu0 %487
    %v490 = vmul.f32 %v483, %v488
    %492 = vrot.lane.b32.xlu0 %v490, 32
    %v493 = vpop.permute.xlu0 %492
    %v495 = vadd.f32 %v485, %v493
    %v496 = vtanh.pop %v495
    %498 = vrot.lane.b32.xlu0 %v496, 64
    %v499 = vpop.permute.xlu0 %498
    %v501 = vmul.f32 %v483, %v499
    %503 = vrot.lane.b32.xlu0 %v501, 32
    %v504 = vpop.permute.xlu0 %503
    %s506 = scalar_lea.vmem [#allocation2], 12
    %507 = vst.msk [vmem:[%s506] sm:$0x3] %vm98, %v504
    %s508 = scalar_lea.vmem %s0, 14
    %v509 = vld [vmem:[%s508] sm:$0x3]
    %v510 = vsel %vm32, %v504, 0
    %512 = vmatpush.msra.mxu0 0.0
    %513 = vmatpush.msra.mxu0 0.0
    %514 = vmatpush.msra.mxu0 0.0
    %515 = vmatpush.msra.mxu0 0.0
    %516 = vmatpush.msra.mxu0 0.0
    %517 = vmatpush.msra.mxu0 0.0
    %518 = vmatpush.msra.mxu0 0.0
    %519 = vmatpush.msra.mxu0 0.0
    %520 = vmatpush.msra.mxu0 0.0
    %521 = vmatpush.msra.mxu0 0.0
    %522 = vmatpush.msra.mxu0 0.0
    %523 = vmatpush.msra.mxu0 0.0
    %524 = vmatpush.msra.mxu0 %v30
    %525 = vmatpush.msra.mxu0 %v29
    %526 = vmatpush.msra.mxu0 %v28
    %527 = vmatpush.msra.mxu0 %v27
    %528 = vmatmul.f32.gmra.mxu0 %v510
    %v529 = vpop.f32.mrf.mxu0
    %v530 = vadd.f32 0.0, %v529
    %531 = vdwg.mxu0
    %v532 = vadd.f32 %v509, %v530
    %v533 = vxor.u32 %v532, 2147483648
    %v534 = vmul.f32 %v533, 1.442695
    %v535 = vpow.pop %v534
    %v536 = vadd.f32 %v535, 1.0
    %v537 = vrcp.pop %v536
    %v538 = vmul.f32 %v536, %v537
    %v539 = vsub.f32 1.0, %v538
    %v540 = vmul.f32 %v537, %v539
    %v541 = vadd.f32 %v537, %v540
    %vm542 = vweird.f32 %v536
    %vm543 = vweird.f32 %v537
    %vm544 = vmor %vm542, %vm543
    %v545 = vsel %vm544, %v537, %v541
    %v546 = vand.u32 2147483647, %v536
    %vm547 = vcmp.eq.f32.partialorder %v546, 8.507059e+37
    %v548 = vand.u32 %v536, 2147483648
    %v549 = vor.u32 1.1754944e-38, %v548
    %v550 = vsel %vm547, %v549, %v545
    %v551 = vmul.f32 1.0, %v550
    %v552 = vtanh.pop %v532
    %v553 = vmul.f32 %v551, %v495
    %555 = vrot.lane.b32.xlu0 %v552, 64
    %v556 = vpop.permute.xlu0 %555
    %v558 = vmul.f32 %v551, %v556
    %560 = vrot.lane.b32.xlu0 %v558, 32
    %v561 = vpop.permute.xlu0 %560
    %v563 = vadd.f32 %v553, %v561
    %v564 = vtanh.pop %v563
    %566 = vrot.lane.b32.xlu0 %v564, 64
    %v567 = vpop.permute.xlu0 %566
    %v569 = vmul.f32 %v551, %v567
    %571 = vrot.lane.b32.xlu0 %v569, 32
    %v572 = vpop.permute.xlu0 %571
    %s574 = scalar_lea.vmem [#allocation2], 14
    %575 = vst.msk [vmem:[%s574] sm:$0x3] %vm98, %v572
    %v576 = vld [vmem:[%s2] sm:$0xff]
    %v577 = vld [vmem:[%s2 + $0x8] sm:$0xff]
    %v578 = vld [vmem:[%s2 + $0x10] sm:$0xff]
    %v579 = vld [vmem:[%s2 + $0x18] sm:$0xff]
    %v580 = vld [vmem:[%s4] sm:$0x1]
    %v582 = vperm.slane %v580, 0
    %v584 = vld [vmem:[#allocation2] sm:$0x3]
    %v586 = vsel %vm32, %v584, 0
    %588 = vmatpush.msra.mxu0 0.0
    %589 = vmatpush.msra.mxu0 0.0
    %590 = vmatpush.msra.mxu0 0.0
    %591 = vmatpush.msra.mxu0 0.0
    %592 = vmatpush.msra.mxu0 0.0
    %593 = vmatpush.msra.mxu0 0.0
    %594 = vmatpush.msra.mxu0 0.0
    %595 = vmatpush.msra.mxu0 0.0
    %596 = vmatpush.msra.mxu0 0.0
    %597 = vmatpush.msra.mxu0 0.0
    %598 = vmatpush.msra.mxu0 0.0
    %599 = vmatpush.msra.mxu0 0.0
    %600 = vmatpush.msra.mxu0 %v579
    %601 = vmatpush.msra.mxu0 %v578
    %602 = vmatpush.msra.mxu0 %v577
    %603 = vmatpush.msra.mxu0 %v576
    %604 = vmatmul.f32.gmra.mxu0 %v586
    %v605 = vpop.f32.mrf.mxu0
    %v606 = vadd.f32 %v582, %v605
    %607 = vdwg.mxu0
    %608 = vst [vmem:[#allocation3] sm:$0x3] %v606
    %v609 = vld [vmem:[%s166] sm:$0x3]
    %v611 = vsel %vm32, %v609, 0
    %613 = vmatpush.msra.mxu0 0.0
    %614 = vmatpush.msra.mxu0 0.0
    %615 = vmatpush.msra.mxu0 0.0
    %616 = vmatpush.msra.mxu0 0.0
    %617 = vmatpush.msra.mxu0 0.0
    %618 = vmatpush.msra.mxu0 0.0
    %619 = vmatpush.msra.mxu0 0.0
    %620 = vmatpush.msra.mxu0 0.0
    %621 = vmatpush.msra.mxu0 0.0
    %622 = vmatpush.msra.mxu0 0.0
    %623 = vmatpush.msra.mxu0 0.0
    %624 = vmatpush.msra.mxu0 0.0
    %625 = vmatpush.msra.mxu0 %v579
    %626 = vmatpush.msra.mxu0 %v578
    %627 = vmatpush.msra.mxu0 %v577
    %628 = vmatpush.msra.mxu0 %v576
    %629 = vmatmul.f32.gmra.mxu0 %v611
    %v630 = vpop.f32.mrf.mxu0
    %v631 = vadd.f32 %v582, %v630
    %632 = vdwg.mxu0
    %s633 = scalar_lea.vmem [#allocation3], 2
    %634 = vst [vmem:[%s633] sm:$0x3] %v631
    %v635 = vld [vmem:[%s234] sm:$0x3]
    %v637 = vsel %vm32, %v635, 0
    %639 = vmatpush.msra.mxu0 0.0
    %640 = vmatpush.msra.mxu0 0.0
    %641 = vmatpush.msra.mxu0 0.0
    %642 = vmatpush.msra.mxu0 0.0
    %643 = vmatpush.msra.mxu0 0.0
    %644 = vmatpush.msra.mxu0 0.0
    %645 = vmatpush.msra.mxu0 0.0
    %646 = vmatpush.msra.mxu0 0.0
    %647 = vmatpush.msra.mxu0 0.0
    %648 = vmatpush.msra.mxu0 0.0
    %649 = vmatpush.msra.mxu0 0.0
    %650 = vmatpush.msra.mxu0 0.0
    %651 = vmatpush.msra.mxu0 %v579
    %652 = vmatpush.msra.mxu0 %v578
    %653 = vmatpush.msra.mxu0 %v577
    %654 = vmatpush.msra.mxu0 %v576
    %655 = vmatmul.f32.gmra.mxu0 %v637
    %v656 = vpop.f32.mrf.mxu0
    %v657 = vadd.f32 %v582, %v656
    %658 = vdwg.mxu0
    %s659 = scalar_lea.vmem [#allocation3], 4
    %660 = vst [vmem:[%s659] sm:$0x3] %v657
    %v661 = vld [vmem:[%s302] sm:$0x3]
    %v663 = vsel %vm32, %v661, 0
    %665 = vmatpush.msra.mxu0 0.0
    %666 = vmatpush.msra.mxu0 0.0
    %667 = vmatpush.msra.mxu0 0.0
    %668 = vmatpush.msra.mxu0 0.0
    %669 = vmatpush.msra.mxu0 0.0
    %670 = vmatpush.msra.mxu0 0.0
    %671 = vmatpush.msra.mxu0 0.0
    %672 = vmatpush.msra.mxu0 0.0
    %673 = vmatpush.msra.mxu0 0.0
    %674 = vmatpush.msra.mxu0 0.0
    %675 = vmatpush.msra.mxu0 0.0
    %676 = vmatpush.msra.mxu0 0.0
    %677 = vmatpush.msra.mxu0 %v579
    %678 = vmatpush.msra.mxu0 %v578
    %679 = vmatpush.msra.mxu0 %v577
    %680 = vmatpush.msra.mxu0 %v576
    %681 = vmatmul.f32.gmra.mxu0 %v663
    %v682 = vpop.f32.mrf.mxu0
    %v683 = vadd.f32 %v582, %v682
    %684 = vdwg.mxu0
    %s685 = scalar_lea.vmem [#allocation3], 6
    %686 = vst [vmem:[%s685] sm:$0x3] %v683
    %v687 = vld [vmem:[%s370] sm:$0x3]
    %v689 = vsel %vm32, %v687, 0
    %691 = vmatpush.msra.mxu0 0.0
    %692 = vmatpush.msra.mxu0 0.0
    %693 = vmatpush.msra.mxu0 0.0
    %694 = vmatpush.msra.mxu0 0.0
    %695 = vmatpush.msra.mxu0 0.0
    %696 = vmatpush.msra.mxu0 0.0
    %697 = vmatpush.msra.mxu0 0.0
    %698 = vmatpush.msra.mxu0 0.0
    %699 = vmatpush.msra.mxu0 0.0
    %700 = vmatpush.msra.mxu0 0.0
    %701 = vmatpush.msra.mxu0 0.0
    %702 = vmatpush.msra.mxu0 0.0
    %703 = vmatpush.msra.mxu0 %v579
    %704 = vmatpush.msra.mxu0 %v578
    %705 = vmatpush.msra.mxu0 %v577
    %706 = vmatpush.msra.mxu0 %v576
    %707 = vmatmul.f32.gmra.mxu0 %v689
    %v708 = vpop.f32.mrf.mxu0
    %v709 = vadd.f32 %v582, %v708
    %710 = vdwg.mxu0
    %s711 = scalar_lea.vmem [#allocation3], 8
    %712 = vst [vmem:[%s711] sm:$0x3] %v709
    %v713 = vld [vmem:[%s438] sm:$0x3]
    %v715 = vsel %vm32, %v713, 0
    %717 = vmatpush.msra.mxu0 0.0
    %718 = vmatpush.msra.mxu0 0.0
    %719 = vmatpush.msra.mxu0 0.0
    %720 = vmatpush.msra.mxu0 0.0
    %721 = vmatpush.msra.mxu0 0.0
    %722 = vmatpush.msra.mxu0 0.0
    %723 = vmatpush.msra.mxu0 0.0
    %724 = vmatpush.msra.mxu0 0.0
    %725 = vmatpush.msra.mxu0 0.0
    %726 = vmatpush.msra.mxu0 0.0
    %727 = vmatpush.msra.mxu0 0.0
    %728 = vmatpush.msra.mxu0 0.0
    %729 = vmatpush.msra.mxu0 %v579
    %730 = vmatpush.msra.mxu0 %v578
    %731 = vmatpush.msra.mxu0 %v577
    %732 = vmatpush.msra.mxu0 %v576
    %733 = vmatmul.f32.gmra.mxu0 %v715
    %v734 = vpop.f32.mrf.mxu0
    %v735 = vadd.f32 %v582, %v734
    %736 = vdwg.mxu0
    %s737 = scalar_lea.vmem [#allocation3], 10
    %738 = vst [vmem:[%s737] sm:$0x3] %v735
    %v739 = vld [vmem:[%s506] sm:$0x3]
    %v741 = vsel %vm32, %v739, 0
    %743 = vmatpush.msra.mxu0 0.0
    %744 = vmatpush.msra.mxu0 0.0
    %745 = vmatpush.msra.mxu0 0.0
    %746 = vmatpush.msra.mxu0 0.0
    %747 = vmatpush.msra.mxu0 0.0
    %748 = vmatpush.msra.mxu0 0.0
    %749 = vmatpush.msra.mxu0 0.0
    %750 = vmatpush.msra.mxu0 0.0
    %751 = vmatpush.msra.mxu0 0.0
    %752 = vmatpush.msra.mxu0 0.0
    %753 = vmatpush.msra.mxu0 0.0
    %754 = vmatpush.msra.mxu0 0.0
    %755 = vmatpush.msra.mxu0 %v579
    %756 = vmatpush.msra.mxu0 %v578
    %757 = vmatpush.msra.mxu0 %v577
    %758 = vmatpush.msra.mxu0 %v576
    %759 = vmatmul.f32.gmra.mxu0 %v741
    %v760 = vpop.f32.mrf.mxu0
    %v761 = vadd.f32 %v582, %v760
    %762 = vdwg.mxu0
    %s763 = scalar_lea.vmem [#allocation3], 12
    %764 = vst [vmem:[%s763] sm:$0x3] %v761
    %v765 = vld [vmem:[%s574] sm:$0x3]
    %v767 = vsel %vm32, %v765, 0
    %769 = vmatpush.msra.mxu0 0.0
    %770 = vmatpush.msra.mxu0 0.0
    %771 = vmatpush.msra.mxu0 0.0
    %772 = vmatpush.msra.mxu0 0.0
    %773 = vmatpush.msra.mxu0 0.0
    %774 = vmatpush.msra.mxu0 0.0
    %775 = vmatpush.msra.mxu0 0.0
    %776 = vmatpush.msra.mxu0 0.0
    %777 = vmatpush.msra.mxu0 0.0
    %778 = vmatpush.msra.mxu0 0.0
    %779 = vmatpush.msra.mxu0 0.0
    %780 = vmatpush.msra.mxu0 0.0
    %781 = vmatpush.msra.mxu0 %v579
    %782 = vmatpush.msra.mxu0 %v578
    %783 = vmatpush.msra.mxu0 %v577
    %784 = vmatpush.msra.mxu0 %v576
    %785 = vmatmul.f32.gmra.mxu0 %v767
    %v786 = vpop.f32.mrf.mxu0
    %v787 = vadd.f32 %v582, %v786
    %788 = vdwg.mxu0
    %s789 = scalar_lea.vmem [#allocation3], 14
    %790 = vst [vmem:[%s789] sm:$0x3] %v787
    %v791 = vld [vmem:[%s3] sm:$0xff]
    %v792 = vld [vmem:[%s3 + $0x8] sm:$0xff]
    %v793 = vld [vmem:[%s3 + $0x10] sm:$0xff]
    %v794 = vld [vmem:[%s3 + $0x18] sm:$0xff]
    %v795 = vld [vmem:[#allocation3] sm:$0x3]
    %796 = vmatpush.msra.mxu0 0.0
    %797 = vmatpush.msra.mxu0 0.0
    %798 = vmatpush.msra.mxu0 0.0
    %799 = vmatpush.msra.mxu0 0.0
    %800 = vmatpush.msra.mxu0 0.0
    %801 = vmatpush.msra.mxu0 0.0
    %802 = vmatpush.msra.mxu0 0.0
    %803 = vmatpush.msra.mxu0 0.0
    %804 = vmatpush.msra.mxu0 0.0
    %805 = vmatpush.msra.mxu0 0.0
    %806 = vmatpush.msra.mxu0 0.0
    %807 = vmatpush.msra.mxu0 0.0
    %808 = vmatpush.msra.mxu0 %v794
    %809 = vmatpush.msra.mxu0 %v793
    %810 = vmatpush.msra.mxu0 %v792
    %811 = vmatpush.msra.mxu0 %v791
    %812 = vmatmul.f32.gmra.mxu0 %v34
    %v813 = vpop.f32.mrf.mxu0
    %v814 = vadd.f32 0.0, %v813
    %815 = vdwg.mxu0
    %v816 = vadd.f32 %v795, %v814
    %v817 = vxor.u32 %v816, 2147483648
    %v818 = vmul.f32 %v817, 1.442695
    %v819 = vpow.pop %v818
    %v820 = vadd.f32 %v819, 1.0
    %v821 = vrcp.pop %v820
    %v822 = vmul.f32 %v820, %v821
    %v823 = vsub.f32 1.0, %v822
    %v824 = vmul.f32 %v821, %v823
    %v825 = vadd.f32 %v821, %v824
    %vm826 = vweird.f32 %v820
    %vm827 = vweird.f32 %v821
    %vm828 = vmor %vm826, %vm827
    %v829 = vsel %vm828, %v821, %v825
    %v830 = vand.u32 2147483647, %v820
    %vm831 = vcmp.eq.f32.partialorder %v830, 8.507059e+37
    %v832 = vand.u32 %v820, 2147483648
    %v833 = vor.u32 1.1754944e-38, %v832
    %v834 = vsel %vm831, %v833, %v829
    %v835 = vmul.f32 1.0, %v834
    %v836 = vtanh.pop %v816
    %v837 = vmul.f32 %v835, 0.0
    %839 = vrot.lane.b32.xlu0 %v836, 64
    %v840 = vpop.permute.xlu0 %839
    %v842 = vmul.f32 %v835, %v840
    %844 = vrot.lane.b32.xlu0 %v842, 32
    %v845 = vpop.permute.xlu0 %844
    %v847 = vadd.f32 %v837, %v845
    %v848 = vtanh.pop %v847
    %850 = vrot.lane.b32.xlu0 %v848, 64
    %v851 = vpop.permute.xlu0 %850
    %v853 = vmul.f32 %v835, %v851
    %v854 = vld [vmem:[%s633] sm:$0x3]
    %856 = vrot.lane.b32.xlu0 %v853, 32
    %v857 = vpop.permute.xlu0 %856
    %v858 = vsel %vm32, %v857, 0
    %860 = vmatpush.msra.mxu0 0.0
    %861 = vmatpush.msra.mxu0 0.0
    %862 = vmatpush.msra.mxu0 0.0
    %863 = vmatpush.msra.mxu0 0.0
    %864 = vmatpush.msra.mxu0 0.0
    %865 = vmatpush.msra.mxu0 0.0
    %866 = vmatpush.msra.mxu0 0.0
    %867 = vmatpush.msra.mxu0 0.0
    %868 = vmatpush.msra.mxu0 0.0
    %869 = vmatpush.msra.mxu0 0.0
    %870 = vmatpush.msra.mxu0 0.0
    %871 = vmatpush.msra.mxu0 0.0
    %872 = vmatpush.msra.mxu0 %v794
    %873 = vmatpush.msra.mxu0 %v793
    %874 = vmatpush.msra.mxu0 %v792
    %875 = vmatpush.msra.mxu0 %v791
    %876 = vmatmul.f32.gmra.mxu0 %v858
    %v877 = vpop.f32.mrf.mxu0
    %v878 = vadd.f32 0.0, %v877
    %879 = vdwg.mxu0
    %v880 = vadd.f32 %v854, %v878
    %v881 = vxor.u32 %v880, 2147483648
    %v882 = vmul.f32 %v881, 1.442695
    %v883 = vpow.pop %v882
    %v884 = vadd.f32 %v883, 1.0
    %v885 = vrcp.pop %v884
    %v886 = vmul.f32 %v884, %v885
    %v887 = vsub.f32 1.0, %v886
    %v888 = vmul.f32 %v885, %v887
    %v889 = vadd.f32 %v885, %v888
    %vm890 = vweird.f32 %v884
    %vm891 = vweird.f32 %v885
    %vm892 = vmor %vm890, %vm891
    %v893 = vsel %vm892, %v885, %v889
    %v894 = vand.u32 2147483647, %v884
    %vm895 = vcmp.eq.f32.partialorder %v894, 8.507059e+37
    %v896 = vand.u32 %v884, 2147483648
    %v897 = vor.u32 1.1754944e-38, %v896
    %v898 = vsel %vm895, %v897, %v893
    %v899 = vmul.f32 1.0, %v898
    %v900 = vtanh.pop %v880
    %v901 = vmul.f32 %v899, %v847
    %903 = vrot.lane.b32.xlu0 %v900, 64
    %v904 = vpop.permute.xlu0 %903
    %v906 = vmul.f32 %v899, %v904
    %908 = vrot.lane.b32.xlu0 %v906, 32
    %v909 = vpop.permute.xlu0 %908
    %v911 = vadd.f32 %v901, %v909
    %v912 = vtanh.pop %v911
    %914 = vrot.lane.b32.xlu0 %v912, 64
    %v915 = vpop.permute.xlu0 %914
    %v917 = vmul.f32 %v899, %v915
    %v918 = vld [vmem:[%s659] sm:$0x3]
    %920 = vrot.lane.b32.xlu0 %v917, 32
    %v921 = vpop.permute.xlu0 %920
    %v922 = vsel %vm32, %v921, 0
    %924 = vmatpush.msra.mxu0 0.0
    %925 = vmatpush.msra.mxu0 0.0
    %926 = vmatpush.msra.mxu0 0.0
    %927 = vmatpush.msra.mxu0 0.0
    %928 = vmatpush.msra.mxu0 0.0
    %929 = vmatpush.msra.mxu0 0.0
    %930 = vmatpush.msra.mxu0 0.0
    %931 = vmatpush.msra.mxu0 0.0
    %932 = vmatpush.msra.mxu0 0.0
    %933 = vmatpush.msra.mxu0 0.0
    %934 = vmatpush.msra.mxu0 0.0
    %935 = vmatpush.msra.mxu0 0.0
    %936 = vmatpush.msra.mxu0 %v794
    %937 = vmatpush.msra.mxu0 %v793
    %938 = vmatpush.msra.mxu0 %v792
    %939 = vmatpush.msra.mxu0 %v791
    %940 = vmatmul.f32.gmra.mxu0 %v922
    %v941 = vpop.f32.mrf.mxu0
    %v942 = vadd.f32 0.0, %v941
    %943 = vdwg.mxu0
    %v944 = vadd.f32 %v918, %v942
    %v945 = vxor.u32 %v944, 2147483648
    %v946 = vmul.f32 %v945, 1.442695
    %v947 = vpow.pop %v946
    %v948 = vadd.f32 %v947, 1.0
    %v949 = vrcp.pop %v948
    %v950 = vmul.f32 %v948, %v949
    %v951 = vsub.f32 1.0, %v950
    %v952 = vmul.f32 %v949, %v951
    %v953 = vadd.f32 %v949, %v952
    %vm954 = vweird.f32 %v948
    %vm955 = vweird.f32 %v949
    %vm956 = vmor %vm954, %vm955
    %v957 = vsel %vm956, %v949, %v953
    %v958 = vand.u32 2147483647, %v948
    %vm959 = vcmp.eq.f32.partialorder %v958, 8.507059e+37
    %v960 = vand.u32 %v948, 2147483648
    %v961 = vor.u32 1.1754944e-38, %v960
    %v962 = vsel %vm959, %v961, %v957
    %v963 = vmul.f32 1.0, %v962
    %v964 = vtanh.pop %v944
    %v965 = vmul.f32 %v963, %v911
    %967 = vrot.lane.b32.xlu0 %v964, 64
    %v968 = vpop.permute.xlu0 %967
    %v970 = vmul.f32 %v963, %v968
    %972 = vrot.lane.b32.xlu0 %v970, 32
    %v973 = vpop.permute.xlu0 %972
    %v975 = vadd.f32 %v965, %v973
    %v976 = vtanh.pop %v975
    %978 = vrot.lane.b32.xlu0 %v976, 64
    %v979 = vpop.permute.xlu0 %978
    %v981 = vmul.f32 %v963, %v979
    %v982 = vld [vmem:[%s685] sm:$0x3]
    %984 = vrot.lane.b32.xlu0 %v981, 32
    %v985 = vpop.permute.xlu0 %984
    %v986 = vsel %vm32, %v985, 0
    %988 = vmatpush.msra.mxu0 0.0
    %989 = vmatpush.msra.mxu0 0.0
    %990 = vmatpush.msra.mxu0 0.0
    %991 = vmatpush.msra.mxu0 0.0
    %992 = vmatpush.msra.mxu0 0.0
    %993 = vmatpush.msra.mxu0 0.0
    %994 = vmatpush.msra.mxu0 0.0
    %995 = vmatpush.msra.mxu0 0.0
    %996 = vmatpush.msra.mxu0 0.0
    %997 = vmatpush.msra.mxu0 0.0
    %998 = vmatpush.msra.mxu0 0.0
    %999 = vmatpush.msra.mxu0 0.0
    %1000 = vmatpush.msra.mxu0 %v794
    %1001 = vmatpush.msra.mxu0 %v793
    %1002 = vmatpush.msra.mxu0 %v792
    %1003 = vmatpush.msra.mxu0 %v791
    %1004 = vmatmul.f32.gmra.mxu0 %v986
    %v1005 = vpop.f32.mrf.mxu0
    %v1006 = vadd.f32 0.0, %v1005
    %1007 = vdwg.mxu0
    %v1008 = vadd.f32 %v982, %v1006
    %v1009 = vxor.u32 %v1008, 2147483648
    %v1010 = vmul.f32 %v1009, 1.442695
    %v1011 = vpow.pop %v1010
    %v1012 = vadd.f32 %v1011, 1.0
    %v1013 = vrcp.pop %v1012
    %v1014 = vmul.f32 %v1012, %v1013
    %v1015 = vsub.f32 1.0, %v1014
    %v1016 = vmul.f32 %v1013, %v1015
    %v1017 = vadd.f32 %v1013, %v1016
    %vm1018 = vweird.f32 %v1012
    %vm1019 = vweird.f32 %v1013
    %vm1020 = vmor %vm1018, %vm1019
    %v1021 = vsel %vm1020, %v1013, %v1017
    %v1022 = vand.u32 2147483647, %v1012
    %vm1023 = vcmp.eq.f32.partialorder %v1022, 8.507059e+37
    %v1024 = vand.u32 %v1012, 2147483648
    %v1025 = vor.u32 1.1754944e-38, %v1024
    %v1026 = vsel %vm1023, %v1025, %v1021
    %v1027 = vmul.f32 1.0, %v1026
    %v1028 = vtanh.pop %v1008
    %v1029 = vmul.f32 %v1027, %v975
    %1031 = vrot.lane.b32.xlu0 %v1028, 64
    %v1032 = vpop.permute.xlu0 %1031
    %v1034 = vmul.f32 %v1027, %v1032
    %1036 = vrot.lane.b32.xlu0 %v1034, 32
    %v1037 = vpop.permute.xlu0 %1036
    %v1039 = vadd.f32 %v1029, %v1037
    %v1040 = vtanh.pop %v1039
    %1042 = vrot.lane.b32.xlu0 %v1040, 64
    %v1043 = vpop.permute.xlu0 %1042
    %v1045 = vmul.f32 %v1027, %v1043
    %v1046 = vld [vmem:[%s711] sm:$0x3]
    %1048 = vrot.lane.b32.xlu0 %v1045, 32
    %v1049 = vpop.permute.xlu0 %1048
    %v1050 = vsel %vm32, %v1049, 0
    %1052 = vmatpush.msra.mxu0 0.0
    %1053 = vmatpush.msra.mxu0 0.0
    %1054 = vmatpush.msra.mxu0 0.0
    %1055 = vmatpush.msra.mxu0 0.0
    %1056 = vmatpush.msra.mxu0 0.0
    %1057 = vmatpush.msra.mxu0 0.0
    %1058 = vmatpush.msra.mxu0 0.0
    %1059 = vmatpush.msra.mxu0 0.0
    %1060 = vmatpush.msra.mxu0 0.0
    %1061 = vmatpush.msra.mxu0 0.0
    %1062 = vmatpush.msra.mxu0 0.0
    %1063 = vmatpush.msra.mxu0 0.0
    %1064 = vmatpush.msra.mxu0 %v794
    %1065 = vmatpush.msra.mxu0 %v793
    %1066 = vmatpush.msra.mxu0 %v792
    %1067 = vmatpush.msra.mxu0 %v791
    %1068 = vmatmul.f32.gmra.mxu0 %v1050
    %v1069 = vpop.f32.mrf.mxu0
    %v1070 = vadd.f32 0.0, %v1069
    %1071 = vdwg.mxu0
    %v1072 = vadd.f32 %v1046, %v1070
    %v1073 = vxor.u32 %v1072, 2147483648
    %v1074 = vmul.f32 %v1073, 1.442695
    %v1075 = vpow.pop %v1074
    %v1076 = vadd.f32 %v1075, 1.0
    %v1077 = vrcp.pop %v1076
    %v1078 = vmul.f32 %v1076, %v1077
    %v1079 = vsub.f32 1.0, %v1078
    %v1080 = vmul.f32 %v1077, %v1079
    %v1081 = vadd.f32 %v1077, %v1080
    %vm1082 = vweird.f32 %v1076
    %vm1083 = vweird.f32 %v1077
    %vm1084 = vmor %vm1082, %vm1083
    %v1085 = vsel %vm1084, %v1077, %v1081
    %v1086 = vand.u32 2147483647, %v1076
    %vm1087 = vcmp.eq.f32.partialorder %v1086, 8.507059e+37
    %v1088 = vand.u32 %v1076, 2147483648
    %v1089 = vor.u32 1.1754944e-38, %v1088
    %v1090 = vsel %vm1087, %v1089, %v1085
    %v1091 = vmul.f32 1.0, %v1090
    %v1092 = vtanh.pop %v1072
    %v1093 = vmul.f32 %v1091, %v1039
    %1095 = vrot.lane.b32.xlu0 %v1092, 64
    %v1096 = vpop.permute.xlu0 %1095
    %v1098 = vmul.f32 %v1091, %v1096
    %1100 = vrot.lane.b32.xlu0 %v1098, 32
    %v1101 = vpop.permute.xlu0 %1100
    %v1103 = vadd.f32 %v1093, %v1101
    %v1104 = vtanh.pop %v1103
    %1106 = vrot.lane.b32.xlu0 %v1104, 64
    %v1107 = vpop.permute.xlu0 %1106
    %v1109 = vmul.f32 %v1091, %v1107
    %v1110 = vld [vmem:[%s737] sm:$0x3]
    %1112 = vrot.lane.b32.xlu0 %v1109, 32
    %v1113 = vpop.permute.xlu0 %1112
    %v1114 = vsel %vm32, %v1113, 0
    %1116 = vmatpush.msra.mxu0 0.0
    %1117 = vmatpush.msra.mxu0 0.0
    %1118 = vmatpush.msra.mxu0 0.0
    %1119 = vmatpush.msra.mxu0 0.0
    %1120 = vmatpush.msra.mxu0 0.0
    %1121 = vmatpush.msra.mxu0 0.0
    %1122 = vmatpush.msra.mxu0 0.0
    %1123 = vmatpush.msra.mxu0 0.0
    %1124 = vmatpush.msra.mxu0 0.0
    %1125 = vmatpush.msra.mxu0 0.0
    %1126 = vmatpush.msra.mxu0 0.0
    %1127 = vmatpush.msra.mxu0 0.0
    %1128 = vmatpush.msra.mxu0 %v794
    %1129 = vmatpush.msra.mxu0 %v793
    %1130 = vmatpush.msra.mxu0 %v792
    %1131 = vmatpush.msra.mxu0 %v791
    %1132 = vmatmul.f32.gmra.mxu0 %v1114
    %v1133 = vpop.f32.mrf.mxu0
    %v1134 = vadd.f32 0.0, %v1133
    %1135 = vdwg.mxu0
    %v1136 = vadd.f32 %v1110, %v1134
    %v1137 = vxor.u32 %v1136, 2147483648
    %v1138 = vmul.f32 %v1137, 1.442695
    %v1139 = vpow.pop %v1138
    %v1140 = vadd.f32 %v1139, 1.0
    %v1141 = vrcp.pop %v1140
    %v1142 = vmul.f32 %v1140, %v1141
    %v1143 = vsub.f32 1.0, %v1142
    %v1144 = vmul.f32 %v1141, %v1143
    %v1145 = vadd.f32 %v1141, %v1144
    %vm1146 = vweird.f32 %v1140
    %vm1147 = vweird.f32 %v1141
    %vm1148 = vmor %vm1146, %vm1147
    %v1149 = vsel %vm1148, %v1141, %v1145
    %v1150 = vand.u32 2147483647, %v1140
    %vm1151 = vcmp.eq.f32.partialorder %v1150, 8.507059e+37
    %v1152 = vand.u32 %v1140, 2147483648
    %v1153 = vor.u32 1.1754944e-38, %v1152
    %v1154 = vsel %vm1151, %v1153, %v1149
    %v1155 = vmul.f32 1.0, %v1154
    %v1156 = vtanh.pop %v1136
    %v1157 = vmul.f32 %v1155, %v1103
    %1159 = vrot.lane.b32.xlu0 %v1156, 64
    %v1160 = vpop.permute.xlu0 %1159
    %v1162 = vmul.f32 %v1155, %v1160
    %1164 = vrot.lane.b32.xlu0 %v1162, 32
    %v1165 = vpop.permute.xlu0 %1164
    %v1167 = vadd.f32 %v1157, %v1165
    %v1168 = vtanh.pop %v1167
    %1170 = vrot.lane.b32.xlu0 %v1168, 64
    %v1171 = vpop.permute.xlu0 %1170
    %v1173 = vmul.f32 %v1155, %v1171
    %v1174 = vld [vmem:[%s763] sm:$0x3]
    %1176 = vrot.lane.b32.xlu0 %v1173, 32
    %v1177 = vpop.permute.xlu0 %1176
    %v1178 = vsel %vm32, %v1177, 0
    %1180 = vmatpush.msra.mxu0 0.0
    %1181 = vmatpush.msra.mxu0 0.0
    %1182 = vmatpush.msra.mxu0 0.0
    %1183 = vmatpush.msra.mxu0 0.0
    %1184 = vmatpush.msra.mxu0 0.0
    %1185 = vmatpush.msra.mxu0 0.0
    %1186 = vmatpush.msra.mxu0 0.0
    %1187 = vmatpush.msra.mxu0 0.0
    %1188 = vmatpush.msra.mxu0 0.0
    %1189 = vmatpush.msra.mxu0 0.0
    %1190 = vmatpush.msra.mxu0 0.0
    %1191 = vmatpush.msra.mxu0 0.0
    %1192 = vmatpush.msra.mxu0 %v794
    %1193 = vmatpush.msra.mxu0 %v793
    %1194 = vmatpush.msra.mxu0 %v792
    %1195 = vmatpush.msra.mxu0 %v791
    %1196 = vmatmul.f32.gmra.mxu0 %v1178
    %v1197 = vpop.f32.mrf.mxu0
    %v1198 = vadd.f32 0.0, %v1197
    %1199 = vdwg.mxu0
    %v1200 = vadd.f32 %v1174, %v1198
    %v1201 = vxor.u32 %v1200, 2147483648
    %v1202 = vmul.f32 %v1201, 1.442695
    %v1203 = vpow.pop %v1202
    %v1204 = vadd.f32 %v1203, 1.0
    %v1205 = vrcp.pop %v1204
    %v1206 = vmul.f32 %v1204, %v1205
    %v1207 = vsub.f32 1.0, %v1206
    %v1208 = vmul.f32 %v1205, %v1207
    %v1209 = vadd.f32 %v1205, %v1208
    %vm1210 = vweird.f32 %v1204
    %vm1211 = vweird.f32 %v1205
    %vm1212 = vmor %vm1210, %vm1211
    %v1213 = vsel %vm1212, %v1205, %v1209
    %v1214 = vand.u32 2147483647, %v1204
    %vm1215 = vcmp.eq.f32.partialorder %v1214, 8.507059e+37
    %v1216 = vand.u32 %v1204, 2147483648
    %v1217 = vor.u32 1.1754944e-38, %v1216
    %v1218 = vsel %vm1215, %v1217, %v1213
    %v1219 = vmul.f32 1.0, %v1218
    %v1220 = vtanh.pop %v1200
    %v1221 = vmul.f32 %v1219, %v1167
    %1223 = vrot.lane.b32.xlu0 %v1220, 64
    %v1224 = vpop.permute.xlu0 %1223
    %v1226 = vmul.f32 %v1219, %v1224
    %1228 = vrot.lane.b32.xlu0 %v1226, 32
    %v1229 = vpop.permute.xlu0 %1228
    %v1231 = vadd.f32 %v1221, %v1229
    %v1232 = vtanh.pop %v1231
    %1234 = vrot.lane.b32.xlu0 %v1232, 64
    %v1235 = vpop.permute.xlu0 %1234
    %v1237 = vmul.f32 %v1219, %v1235
    %v1238 = vld [vmem:[%s789] sm:$0x3]
    %1240 = vrot.lane.b32.xlu0 %v1237, 32
    %v1241 = vpop.permute.xlu0 %1240
    %v1242 = vsel %vm32, %v1241, 0
    %1244 = vmatpush.msra.mxu0 0.0
    %1245 = vmatpush.msra.mxu0 0.0
    %1246 = vmatpush.msra.mxu0 0.0
    %1247 = vmatpush.msra.mxu0 0.0
    %1248 = vmatpush.msra.mxu0 0.0
    %1249 = vmatpush.msra.mxu0 0.0
    %1250 = vmatpush.msra.mxu0 0.0
    %1251 = vmatpush.msra.mxu0 0.0
    %1252 = vmatpush.msra.mxu0 0.0
    %1253 = vmatpush.msra.mxu0 0.0
    %1254 = vmatpush.msra.mxu0 0.0
    %1255 = vmatpush.msra.mxu0 0.0
    %1256 = vmatpush.msra.mxu0 %v794
    %1257 = vmatpush.msra.mxu0 %v793
    %1258 = vmatpush.msra.mxu0 %v792
    %1259 = vmatpush.msra.mxu0 %v791
    %1260 = vmatmul.f32.gmra.mxu0 %v1242
    %v1261 = vpop.f32.mrf.mxu0
    %v1262 = vadd.f32 0.0, %v1261
    %1263 = vdwg.mxu0
    %v1264 = vadd.f32 %v1238, %v1262
    %v1265 = vxor.u32 %v1264, 2147483648
    %v1266 = vmul.f32 %v1265, 1.442695
    %v1267 = vpow.pop %v1266
    %v1268 = vadd.f32 %v1267, 1.0
    %v1269 = vrcp.pop %v1268
    %v1270 = vmul.f32 %v1268, %v1269
    %v1271 = vsub.f32 1.0, %v1270
    %v1272 = vmul.f32 %v1269, %v1271
    %v1273 = vadd.f32 %v1269, %v1272
    %vm1274 = vweird.f32 %v1268
    %vm1275 = vweird.f32 %v1269
    %vm1276 = vmor %vm1274, %vm1275
    %v1277 = vsel %vm1276, %v1269, %v1273
    %v1278 = vand.u32 2147483647, %v1268
    %vm1279 = vcmp.eq.f32.partialorder %v1278, 8.507059e+37
    %v1280 = vand.u32 %v1268, 2147483648
    %v1281 = vor.u32 1.1754944e-38, %v1280
    %v1282 = vsel %vm1279, %v1281, %v1277
    %v1283 = vmul.f32 1.0, %v1282
    %v1284 = vtanh.pop %v1264
    %v1285 = vmul.f32 %v1283, %v1231
    %1287 = vrot.lane.b32.xlu0 %v1284, 64
    %v1288 = vpop.permute.xlu0 %1287
    %v1290 = vmul.f32 %v1283, %v1288
    %1292 = vrot.lane.b32.xlu0 %v1290, 32
    %v1293 = vpop.permute.xlu0 %1292
    %v1295 = vadd.f32 %v1285, %v1293
    %v1296 = vtanh.pop %v1295
    %1298 = vrot.lane.b32.xlu0 %v1296, 64
    %v1299 = vpop.permute.xlu0 %1298
    %v1301 = vmul.f32 %v1283, %v1299
    %v1302 = vld [vmem:[%s5] sm:$0xff]
    %v1303 = vld [vmem:[%s5 + $0x8] sm:$0xff]
    %v1304 = vld [vmem:[%s5 + $0x10] sm:$0xff]
    %v1305 = vld [vmem:[%s5 + $0x18] sm:$0xff]
    %v1306 = vld [vmem:[%s6] sm:$0x1]
    %v1308 = vperm.slane %v1306, 0
    %1311 = vrot.lane.b32.xlu0 %v1301, 32
    %v1312 = vpop.permute.xlu0 %1311
    %v1313 = vsel %vm32, %v1312, 0
    %1315 = vmatpush.msra.mxu0 0.0
    %1316 = vmatpush.msra.mxu0 0.0
    %1317 = vmatpush.msra.mxu0 0.0
    %1318 = vmatpush.msra.mxu0 0.0
    %1319 = vmatpush.msra.mxu0 0.0
    %1320 = vmatpush.msra.mxu0 0.0
    %1321 = vmatpush.msra.mxu0 0.0
    %1322 = vmatpush.msra.mxu0 0.0
    %1323 = vmatpush.msra.mxu0 0.0
    %1324 = vmatpush.msra.mxu0 0.0
    %1325 = vmatpush.msra.mxu0 0.0
    %1326 = vmatpush.msra.mxu0 0.0
    %1327 = vmatpush.msra.mxu0 %v1305
    %1328 = vmatpush.msra.mxu0 %v1304
    %1329 = vmatpush.msra.mxu0 %v1303
    %1330 = vmatpush.msra.mxu0 %v1302
    %1331 = vmatmul.f32.gmra.mxu0 %v1313
    %v1332 = vpop.f32.mrf.mxu0
    %v1333 = vadd.f32 %v1308, %v1332
    %1334 = vdwg.mxu0
    %vm1335 = vcmask 25600
    %1336 = vst.msk [vmem:[#allocation4] sm:$0x3] %vm1335, %v1333
    // Predicated region
    $region30: #{lstm_model_forward.1} parent=1 // pred_check
      _
    $region31: #{lstm_model_forward.1} parent=1 // pred_check_branch
      %1338 = sbr.rel (0) target = $region33
    $region32: #{lstm_model_forward.1} parent=1 // pred_region
      %1340 = vsyncadd [#allocation5], 0
      %s1342 = sshll.u32 [#allocation4], 4
      %s1343 = int_to_ptr.vmem [resolvable:$true] %s1342
      %s1344 = sshll.u32 %s7, 4
      %s1345 = int_to_ptr.hbm [resolvable:$true] %s1344
      %1347 = dma.vmem_to_hbm [thread:$0]  %s1343, 32, %s1345, [#allocation5]
    $region33: #{lstm_model_forward.1} parent=1 // pred_fallthru
      _
    // Predicated region
    $region34: #{lstm_model_forward.1} parent=1 // pred_check
      _
    $region35: #{lstm_model_forward.1} parent=1 // pred_check_branch
      %1349 = sbr.rel (0) target = $region37
    $region36: #{lstm_model_forward.1} parent=1 // pred_region
      %1351 = dma.done [#allocation5], 32
    $region37: #{lstm_model_forward.1} parent=1 // pred_fallthru
      _
    %1352 = vsyncpa [#allocation5], 1

</llo_original>
